<compile_context>
chip_gen: v7x
topology: tpu7x:2x2x1
jax: 0.10.0
libtpu: 0.0.40
codegen_flags: <defaults>
</compile_context>

<pallas_src>
import functools

import jax
import jax.numpy as jnp
import numpy as np
from jax.experimental import pallas as pl
from jax.experimental.pallas import tpu as pltpu


def _block_kernel(x_ref, w_ref, cb_ref, gmat_ref, mask_ref, a_ref, b_ref,
                  o_ref, cols_ref, *, offsets, cnt, inv_cnt, eps):
    """One batch element per grid step.

    x_ref    : (1, C_in, P)      bf16 zero-padded input, flat spatial on lanes
    w_ref    : (C_out, 27*C_in)  bf16 standardized taps, K = ((kd*3+kh)*3+kw)*C_in + ci
    cb_ref   : (C_out, 1)        f32 conv bias
    gmat_ref : (C_out, C_out)    f32 group-membership matrix (block-diag ones)
    mask_ref : (1, L)            f32 1.0 on valid (non-halo) output columns
    a_ref    : (1, C_out, 1)     folded scale = gamma * (scale + 1)
    b_ref    : (1, C_out, 1)     folded shift = beta * (scale + 1) + shift
    o_ref    : (1, C_out, L)
    cols_ref : (27*C_in, L)      f32 VMEM im2col scratch
    """
    c_in = x_ref.shape[1]
    l = o_ref.shape[2]
    x = x_ref[0]                                       # (C_in, P) bf16

    # im2col: halo padding makes every tap a constant lane offset, so each
    # shifted view is copied exactly once; the conv then collapses into a
    # single fat-K (C_out, 27*C_in) @ (27*C_in, L) bf16 MXU matmul.
    for k, off in enumerate(offsets):
        cols_ref[k * c_in:(k + 1) * c_in, :] = (
            x[:, off:off + l].astype(jnp.float32))

    acc = jnp.dot(w_ref[...], cols_ref[...].astype(jnp.bfloat16),
                  preferred_element_type=jnp.float32)  # (C_out, L) f32

    m = mask_ref[...]                                  # (1, L)
    bias = cb_ref[...]                                 # (C_out, 1)
    gmat = gmat_ref[...]                               # (C_out, C_out)

    # GroupNorm, reduce-then-mix: exact f32 lane reductions down to (C_out, 1),
    # then a tiny group mix on those vectors.  Conv bias folded in analytically
    # (bias * count on the sums, (mean - bias) on the centering).
    s = jnp.sum(acc * m, axis=-1, keepdims=True) + bias * cnt          # (C,1)
    mean = jnp.dot(gmat, s, preferred_element_type=jnp.float32) * inv_cnt
    zc = acc - (mean - bias)                    # centered conv(+bias) output
    q = jnp.sum(zc * zc * m, axis=-1, keepdims=True)                   # (C,1)
    var = jnp.dot(gmat, q, preferred_element_type=jnp.float32) * inv_cnt
    rinv = jax.lax.rsqrt(var + eps)

    # Folded GN affine + (scale+1, shift), then SiLU (reciprocal on the EUP).
    y = zc * (rinv * a_ref[0]) + b_ref[0]
    sig = pl.reciprocal(1.0 + jnp.exp(-y), approx=True)
    o_ref[0] = (y * sig).astype(o_ref.dtype)


def block_forward(x, conv_w, conv_b, gn_gamma, gn_beta,
                  scale_shift=None, *, groups=8):
    """x: (N, C_in, D, H, W).  conv_w: (C_out, C_in, 3, 3, 3).  conv_b: (C_out,)."""
    n, c_in, d, h, w = x.shape
    c_out = conv_w.shape[0]
    assert c_out % groups == 0
    cg = c_out // groups
    f32, bf16 = jnp.float32, jnp.bfloat16
    eps_ws = 1e-5 if x.dtype == jnp.float32 else 1e-3   # WeightStandardizedConv3d
    eps_gn = 1e-5                                       # nn.GroupNorm default

    # ---- host-side parameter prep (param-only work, hoisted out of kernel) ----
    wf = conv_w.astype(f32)
    wm = jnp.mean(wf, axis=(1, 2, 3, 4), keepdims=True)
    wv = jnp.mean((wf - wm) ** 2, axis=(1, 2, 3, 4), keepdims=True)
    w_std = (wf - wm) * jax.lax.rsqrt(wv + eps_ws)
    # Dense fat-K layout: (C_out, C_in, 3,3,3) -> (C_out, kd,kh,kw, C_in)
    # -> (C_out, 27*C_in), K index = ((kd*3+kh)*3+kw)*C_in + ci.
    w_mat = jnp.transpose(w_std, (0, 2, 3, 4, 1)).reshape(c_out, 27 * c_in)
    w_mat = w_mat.astype(bf16)

    if scale_shift is not None:
        scale, shift = scale_shift
        scale = scale.astype(f32).reshape(n, c_out)
        shift = shift.astype(f32).reshape(n, c_out)
    else:
        scale = jnp.zeros((n, c_out), f32)
        shift = jnp.zeros((n, c_out), f32)
    gamma = gn_gamma.astype(f32).reshape(1, c_out)
    beta = gn_beta.astype(f32).reshape(1, c_out)
    a_fold = (gamma * (scale + 1.0)).reshape(n, c_out, 1)
    b_fold = (beta * (scale + 1.0) + shift).reshape(n, c_out, 1)
    bias = conv_b.astype(f32).reshape(c_out, 1)

    # group-membership matrix: gmat[c, c'] = 1 iff same contiguous group
    gmat = jnp.asarray(np.kron(np.eye(groups, dtype=np.float32),
                               np.ones((cg, cg), np.float32)))   # (C_out, C_out)

    # ---- layout: keep NCDHW, halo-pad and flatten spatial onto lanes ----
    dp, hp, wp = d + 3, h + 2, w + 2        # +1 extra D plane keeps every
    p_tot = dp * hp * wp                    # shifted tap read in bounds
    l_out = d * hp * wp
    # TODO(synk): replace this pad (and the crop below) with in-kernel DMA of
    # unpadded planes into zero-initialised VMEM at production sizes.
    x_pad = jnp.pad(x.astype(bf16), ((0, 0), (0, 0), (1, 2), (1, 1), (1, 1)))
    x_flat = x_pad.reshape(n, c_in, p_tot)

    offsets = tuple(kd * hp * wp + kh * wp + kw
                    for kd in range(3) for kh in range(3) for kw in range(3))

    # valid (non-halo) columns of the flattened output grid (tiny, reused
    # across the grid; kept as an input to avoid in-kernel integer div/mod)
    pos = np.arange(l_out)
    valid = ((((pos // wp) % hp) < h) & ((pos % wp) < w))
    mask = jnp.asarray(valid.astype(np.float32).reshape(1, l_out))

    cnt = float(d * h * w)            # valid columns per channel
    inv_cnt = 1.0 / (cg * cnt)        # 1 / elements per group

    kernel = functools.partial(_block_kernel, offsets=offsets,
                               cnt=cnt, inv_cnt=inv_cnt, eps=eps_gn)

    out_flat = pl.pallas_call(
        kernel,
        out_shape=jax.ShapeDtypeStruct((n, c_out, l_out), x.dtype),
        grid_spec=pltpu.PrefetchScalarGridSpec(
            num_scalar_prefetch=0,
            grid=(n,),
            in_specs=[
                pl.BlockSpec((1, c_in, p_tot), lambda i: (i, 0, 0)),
                pl.BlockSpec((c_out, 27 * c_in), lambda i: (0, 0)),
                pl.BlockSpec((c_out, 1), lambda i: (0, 0)),
                pl.BlockSpec((c_out, c_out), lambda i: (0, 0)),
                pl.BlockSpec((1, l_out), lambda i: (0, 0)),
                pl.BlockSpec((1, c_out, 1), lambda i: (i, 0, 0)),
                pl.BlockSpec((1, c_out, 1), lambda i: (i, 0, 0)),
            ],
            out_specs=pl.BlockSpec((1, c_out, l_out), lambda i: (i, 0, 0)),
            scratch_shapes=[pltpu.VMEM((27 * c_in, l_out), jnp.float32)],
        ),
        compiler_params=pltpu.CompilerParams(
            dimension_semantics=("parallel",),
            vmem_limit_bytes=32 * 1024 * 1024),
    )(x_flat, w_mat, bias, gmat, mask, a_fold, b_fold)

    # Drop halo columns: (N, C_out, D*Hp*Wp) -> (N, C_out, D, H, W).
    return out_flat.reshape(n, c_out, d, hp, wp)[:, :, :, :h, :w]


def _reference(x, conv_w, conv_b, gamma, beta, scale, shift, groups):
    eps = 1e-5
    wm = jnp.mean(conv_w, axis=(1, 2, 3, 4), keepdims=True)
    wv = jnp.mean((conv_w - wm) ** 2, axis=(1, 2, 3, 4), keepdims=True)
    w_std = (conv_w - wm) * jax.lax.rsqrt(wv + eps)
    y = jax.lax.conv_general_dilated(
        x, w_std, window_strides=(1, 1, 1),
        padding=((1, 1), (1, 1), (1, 1)),
        dimension_numbers=("NCDHW", "OIDHW", "NCDHW"),
        precision=jax.lax.Precision.HIGHEST)
    y = y + conv_b.reshape(1, -1, 1, 1, 1)
    n, c, d, h, w = y.shape
    cg = c // groups
    yg = y.reshape(n, groups, cg, d, h, w)
    mu = jnp.mean(yg, axis=(2, 3, 4, 5), keepdims=True)
    var = jnp.mean((yg - mu) ** 2, axis=(2, 3, 4, 5), keepdims=True)
    yn = ((yg - mu) * jax.lax.rsqrt(var + eps)).reshape(n, c, d, h, w)
    yn = yn * gamma.reshape(1, -1, 1, 1, 1) + beta.reshape(1, -1, 1, 1, 1)
    yn = yn * (scale + 1.0) + shift
    return yn * jax.nn.sigmoid(yn)


if __name__ == "__main__":
    key = jax.random.PRNGKey(0)
    kx, kw, kb, kg, kbe, ks, ksh = jax.random.split(key, 7)

    N, C_IN, C_OUT, D, H, W = 2, 8, 16, 8, 8, 8
    GROUPS = 8

    x = jax.random.normal(kx, (N, C_IN, D, H, W), dtype=jnp.float32)
    conv_w = 0.2 * jax.random.normal(kw, (C_OUT, C_IN, 3, 3, 3), dtype=jnp.float32)
    conv_b = 0.1 * jax.random.normal(kb, (C_OUT,), dtype=jnp.float32)
    gamma = 1.0 + 0.1 * jax.random.normal(kg, (C_OUT,), dtype=jnp.float32)
    beta = 0.1 * jax.random.normal(kbe, (C_OUT,), dtype=jnp.float32)
    scale = 0.1 * jax.random.normal(ks, (N, C_OUT, 1, 1, 1), dtype=jnp.float32)
    shift = 0.1 * jax.random.normal(ksh, (N, C_OUT, 1, 1, 1), dtype=jnp.float32)

    out = block_forward(x, conv_w, conv_b, gamma, beta,
                        scale_shift=(scale, shift), groups=GROUPS)
    out = jax.block_until_ready(out)

    ref = _reference(x, conv_w, conv_b, gamma, beta, scale, shift, GROUPS)
    # Tolerance re-derived for the bf16 MXU path: K=216 bf16 products accumulate
    # ~3e-3 abs error on GN-normalized values (f32 reference); 3e-2 covers tails.
    np.testing.assert_allclose(np.asarray(out), np.asarray(ref),
                               rtol=3e-2, atol=3e-2)
    print("KERNEL_OK")
</pallas_src>

<mosaic_0001>
module attributes {stable_mosaic.version = 11 : i64} {
  func.func @_block_kernel(%arg0: i32, %arg1: memref<1x8x1100xbf16, #tpu.memory_space<vmem>>, %arg2: memref<16x216xbf16, #tpu.memory_space<vmem>>, %arg3: memref<16x1xf32, #tpu.memory_space<vmem>>, %arg4: memref<16x16xf32, #tpu.memory_space<vmem>>, %arg5: memref<1x800xf32, #tpu.memory_space<vmem>>, %arg6: memref<1x16x1xf32, #tpu.memory_space<vmem>>, %arg7: memref<1x16x1xf32, #tpu.memory_space<vmem>>, %arg8: memref<1x16x800xf32, #tpu.memory_space<vmem>>, %arg9: memref<216x800xf32, #tpu.memory_space<vmem>>) attributes {dimension_semantics = [#tpu.dimension_semantics<parallel>], iteration_bounds = array<i64: 2>, scalar_prefetch = 0 : i64, scratch_operands = 1 : i64, tpu.core_type = #tpu.core_type<tc>, window_params = [{transform_indices = @transform_0, window_bounds = array<i64: 1, 8, 1100>}, {pipeline_mode = #tpu.pipeline_mode<synchronous>, transform_indices = @transform_1, window_bounds = array<i64: 16, 216>}, {pipeline_mode = #tpu.pipeline_mode<synchronous>, transform_indices = @transform_2, window_bounds = array<i64: 16, 1>}, {pipeline_mode = #tpu.pipeline_mode<synchronous>, transform_indices = @transform_3, window_bounds = array<i64: 16, 16>}, {pipeline_mode = #tpu.pipeline_mode<synchronous>, transform_indices = @transform_4, window_bounds = array<i64: 1, 800>}, {transform_indices = @transform_5, window_bounds = array<i64: 1, 16, 1>}, {transform_indices = @transform_6, window_bounds = array<i64: 1, 16, 1>}, {transform_indices = @transform_7, window_bounds = array<i64: 1, 16, 800>}]} {
    %c0 = arith.constant 0 : index
    %c0_0 = arith.constant 0 : index
    %c0_1 = arith.constant 0 : index
    %0 = vector.load %arg1[%c0, %c0_0, %c0_1] : memref<1x8x1100xbf16, #tpu.memory_space<vmem>>, vector<1x8x1100xbf16>
    %1 = vector.shape_cast %0 : vector<1x8x1100xbf16> to vector<8x1100xbf16>
    %2 = vector.extract_strided_slice %1 {offsets = [0, 0], sizes = [8, 800], strides = [1, 1]} : vector<8x1100xbf16> to vector<8x800xbf16>
    %3 = arith.extf %2 : vector<8x800xbf16> to vector<8x800xf32>
    %c0_2 = arith.constant 0 : index
    %c0_3 = arith.constant 0 : index
    %4 = vector.load %arg9[%c0_2, %c0_3] : memref<216x800xf32, #tpu.memory_space<vmem>>, vector<8x800xf32>
    tpu.vector_store %arg9[%c0_2, %c0_3], %3 {strides = array<i32>} : memref<216x800xf32, #tpu.memory_space<vmem>>, vector<8x800xf32>,
    %5 = vector.extract_strided_slice %1 {offsets = [0, 1], sizes = [8, 800], strides = [1, 1]} : vector<8x1100xbf16> to vector<8x800xbf16>
    %6 = arith.extf %5 : vector<8x800xbf16> to vector<8x800xf32>
    %c8 = arith.constant 8 : index
    %c0_4 = arith.constant 0 : index
    %7 = vector.load %arg9[%c8, %c0_4] : memref<216x800xf32, #tpu.memory_space<vmem>>, vector<8x800xf32>
    tpu.vector_store %arg9[%c8, %c0_4], %6 {strides = array<i32>} : memref<216x800xf32, #tpu.memory_space<vmem>>, vector<8x800xf32>,
    %8 = vector.extract_strided_slice %1 {offsets = [0, 2], sizes = [8, 800], strides = [1, 1]} : vector<8x1100xbf16> to vector<8x800xbf16>
    %9 = arith.extf %8 : vector<8x800xbf16> to vector<8x800xf32>
    %c16 = arith.constant 16 : index
    %c0_5 = arith.constant 0 : index
    %10 = vector.load %arg9[%c16, %c0_5] : memref<216x800xf32, #tpu.memory_space<vmem>>, vector<8x800xf32>
    tpu.vector_store %arg9[%c16, %c0_5], %9 {strides = array<i32>} : memref<216x800xf32, #tpu.memory_space<vmem>>, vector<8x800xf32>,
    %11 = vector.extract_strided_slice %1 {offsets = [0, 10], sizes = [8, 800], strides = [1, 1]} : vector<8x1100xbf16> to vector<8x800xbf16>
    %12 = arith.extf %11 : vector<8x800xbf16> to vector<8x800xf32>
    %c24 = arith.constant 24 : index
    %c0_6 = arith.constant 0 : index
    %13 = vector.load %arg9[%c24, %c0_6] : memref<216x800xf32, #tpu.memory_space<vmem>>, vector<8x800xf32>
    tpu.vector_store %arg9[%c24, %c0_6], %12 {strides = array<i32>} : memref<216x800xf32, #tpu.memory_space<vmem>>, vector<8x800xf32>,
    %14 = vector.extract_strided_slice %1 {offsets = [0, 11], sizes = [8, 800], strides = [1, 1]} : vector<8x1100xbf16> to vector<8x800xbf16>
    %15 = arith.extf %14 : vector<8x800xbf16> to vector<8x800xf32>
    %c32 = arith.constant 32 : index
    %c0_7 = arith.constant 0 : index
    %16 = vector.load %arg9[%c32, %c0_7] : memref<216x800xf32, #tpu.memory_space<vmem>>, vector<8x800xf32>
    tpu.vector_store %arg9[%c32, %c0_7], %15 {strides = array<i32>} : memref<216x800xf32, #tpu.memory_space<vmem>>, vector<8x800xf32>,
    %17 = vector.extract_strided_slice %1 {offsets = [0, 12], sizes = [8, 800], strides = [1, 1]} : vector<8x1100xbf16> to vector<8x800xbf16>
    %18 = arith.extf %17 : vector<8x800xbf16> to vector<8x800xf32>
    %c40 = arith.constant 40 : index
    %c0_8 = arith.constant 0 : index
    %19 = vector.load %arg9[%c40, %c0_8] : memref<216x800xf32, #tpu.memory_space<vmem>>, vector<8x800xf32>
    tpu.vector_store %arg9[%c40, %c0_8], %18 {strides = array<i32>} : memref<216x800xf32, #tpu.memory_space<vmem>>, vector<8x800xf32>,
    %20 = vector.extract_strided_slice %1 {offsets = [0, 20], sizes = [8, 800], strides = [1, 1]} : vector<8x1100xbf16> to vector<8x800xbf16>
    %21 = arith.extf %20 : vector<8x800xbf16> to vector<8x800xf32>
    %c48 = arith.constant 48 : index
    %c0_9 = arith.constant 0 : index
    %22 = vector.load %arg9[%c48, %c0_9] : memref<216x800xf32, #tpu.memory_space<vmem>>, vector<8x800xf32>
    tpu.vector_store %arg9[%c48, %c0_9], %21 {strides = array<i32>} : memref<216x800xf32, #tpu.memory_space<vmem>>, vector<8x800xf32>,
    %23 = vector.extract_strided_slice %1 {offsets = [0, 21], sizes = [8, 800], strides = [1, 1]} : vector<8x1100xbf16> to vector<8x800xbf16>
    %24 = arith.extf %23 : vector<8x800xbf16> to vector<8x800xf32>
    %c56 = arith.constant 56 : index
    %c0_10 = arith.constant 0 : index
    %25 = vector.load %arg9[%c56, %c0_10] : memref<216x800xf32, #tpu.memory_space<vmem>>, vector<8x800xf32>
    tpu.vector_store %arg9[%c56, %c0_10], %24 {strides = array<i32>} : memref<216x800xf32, #tpu.memory_space<vmem>>, vector<8x800xf32>,
    %26 = vector.extract_strided_slice %1 {offsets = [0, 22], sizes = [8, 800], strides = [1, 1]} : vector<8x1100xbf16> to vector<8x800xbf16>
    %27 = arith.extf %26 : vector<8x800xbf16> to vector<8x800xf32>
    %c64 = arith.constant 64 : index
    %c0_11 = arith.constant 0 : index
    %28 = vector.load %arg9[%c64, %c0_11] : memref<216x800xf32, #tpu.memory_space<vmem>>, vector<8x800xf32>
    tpu.vector_store %arg9[%c64, %c0_11], %27 {strides = array<i32>} : memref<216x800xf32, #tpu.memory_space<vmem>>, vector<8x800xf32>,
    %29 = vector.extract_strided_slice %1 {offsets = [0, 100], sizes = [8, 800], strides = [1, 1]} : vector<8x1100xbf16> to vector<8x800xbf16>
    %30 = arith.extf %29 : vector<8x800xbf16> to vector<8x800xf32>
    %c72 = arith.constant 72 : index
    %c0_12 = arith.constant 0 : index
    %31 = vector.load %arg9[%c72, %c0_12] : memref<216x800xf32, #tpu.memory_space<vmem>>, vector<8x800xf32>
    tpu.vector_store %arg9[%c72, %c0_12], %30 {strides = array<i32>} : memref<216x800xf32, #tpu.memory_space<vmem>>, vector<8x800xf32>,
    %32 = vector.extract_strided_slice %1 {offsets = [0, 101], sizes = [8, 800], strides = [1, 1]} : vector<8x1100xbf16> to vector<8x800xbf16>
    %33 = arith.extf %32 : vector<8x800xbf16> to vector<8x800xf32>
    %c80 = arith.constant 80 : index
    %c0_13 = arith.constant 0 : index
    %34 = vector.load %arg9[%c80, %c0_13] : memref<216x800xf32, #tpu.memory_space<vmem>>, vector<8x800xf32>
    tpu.vector_store %arg9[%c80, %c0_13], %33 {strides = array<i32>} : memref<216x800xf32, #tpu.memory_space<vmem>>, vector<8x800xf32>,
    %35 = vector.extract_strided_slice %1 {offsets = [0, 102], sizes = [8, 800], strides = [1, 1]} : vector<8x1100xbf16> to vector<8x800xbf16>
    %36 = arith.extf %35 : vector<8x800xbf16> to vector<8x800xf32>
    %c88 = arith.constant 88 : index
    %c0_14 = arith.constant 0 : index
    %37 = vector.load %arg9[%c88, %c0_14] : memref<216x800xf32, #tpu.memory_space<vmem>>, vector<8x800xf32>
    tpu.vector_store %arg9[%c88, %c0_14], %36 {strides = array<i32>} : memref<216x800xf32, #tpu.memory_space<vmem>>, vector<8x800xf32>,
    %38 = vector.extract_strided_slice %1 {offsets = [0, 110], sizes = [8, 800], strides = [1, 1]} : vector<8x1100xbf16> to vector<8x800xbf16>
    %39 = arith.extf %38 : vector<8x800xbf16> to vector<8x800xf32>
    %c96 = arith.constant 96 : index
    %c0_15 = arith.constant 0 : index
    %40 = vector.load %arg9[%c96, %c0_15] : memref<216x800xf32, #tpu.memory_space<vmem>>, vector<8x800xf32>
    tpu.vector_store %arg9[%c96, %c0_15], %39 {strides = array<i32>} : memref<216x800xf32, #tpu.memory_space<vmem>>, vector<8x800xf32>,
    %41 = vector.extract_strided_slice %1 {offsets = [0, 111], sizes = [8, 800], strides = [1, 1]} : vector<8x1100xbf16> to vector<8x800xbf16>
    %42 = arith.extf %41 : vector<8x800xbf16> to vector<8x800xf32>
    %c104 = arith.constant 104 : index
    %c0_16 = arith.constant 0 : index
    %43 = vector.load %arg9[%c104, %c0_16] : memref<216x800xf32, #tpu.memory_space<vmem>>, vector<8x800xf32>
    tpu.vector_store %arg9[%c104, %c0_16], %42 {strides = array<i32>} : memref<216x800xf32, #tpu.memory_space<vmem>>, vector<8x800xf32>,
    %44 = vector.extract_strided_slice %1 {offsets = [0, 112], sizes = [8, 800], strides = [1, 1]} : vector<8x1100xbf16> to vector<8x800xbf16>
    %45 = arith.extf %44 : vector<8x800xbf16> to vector<8x800xf32>
    %c112 = arith.constant 112 : index
    %c0_17 = arith.constant 0 : index
    %46 = vector.load %arg9[%c112, %c0_17] : memref<216x800xf32, #tpu.memory_space<vmem>>, vector<8x800xf32>
    tpu.vector_store %arg9[%c112, %c0_17], %45 {strides = array<i32>} : memref<216x800xf32, #tpu.memory_space<vmem>>, vector<8x800xf32>,
    %47 = vector.extract_strided_slice %1 {offsets = [0, 120], sizes = [8, 800], strides = [1, 1]} : vector<8x1100xbf16> to vector<8x800xbf16>
    %48 = arith.extf %47 : vector<8x800xbf16> to vector<8x800xf32>
    %c120 = arith.constant 120 : index
    %c0_18 = arith.constant 0 : index
    %49 = vector.load %arg9[%c120, %c0_18] : memref<216x800xf32, #tpu.memory_space<vmem>>, vector<8x800xf32>
    tpu.vector_store %arg9[%c120, %c0_18], %48 {strides = array<i32>} : memref<216x800xf32, #tpu.memory_space<vmem>>, vector<8x800xf32>,
    %50 = vector.extract_strided_slice %1 {offsets = [0, 121], sizes = [8, 800], strides = [1, 1]} : vector<8x1100xbf16> to vector<8x800xbf16>
    %51 = arith.extf %50 : vector<8x800xbf16> to vector<8x800xf32>
    %c128 = arith.constant 128 : index
    %c0_19 = arith.constant 0 : index
    %52 = vector.load %arg9[%c128, %c0_19] : memref<216x800xf32, #tpu.memory_space<vmem>>, vector<8x800xf32>
    tpu.vector_store %arg9[%c128, %c0_19], %51 {strides = array<i32>} : memref<216x800xf32, #tpu.memory_space<vmem>>, vector<8x800xf32>,
    %53 = vector.extract_strided_slice %1 {offsets = [0, 122], sizes = [8, 800], strides = [1, 1]} : vector<8x1100xbf16> to vector<8x800xbf16>
    %54 = arith.extf %53 : vector<8x800xbf16> to vector<8x800xf32>
    %c136 = arith.constant 136 : index
    %c0_20 = arith.constant 0 : index
    %55 = vector.load %arg9[%c136, %c0_20] : memref<216x800xf32, #tpu.memory_space<vmem>>, vector<8x800xf32>
    tpu.vector_store %arg9[%c136, %c0_20], %54 {strides = array<i32>} : memref<216x800xf32, #tpu.memory_space<vmem>>, vector<8x800xf32>,
    %56 = vector.extract_strided_slice %1 {offsets = [0, 200], sizes = [8, 800], strides = [1, 1]} : vector<8x1100xbf16> to vector<8x800xbf16>
    %57 = arith.extf %56 : vector<8x800xbf16> to vector<8x800xf32>
    %c144 = arith.constant 144 : index
    %c0_21 = arith.constant 0 : index
    %58 = vector.load %arg9[%c144, %c0_21] : memref<216x800xf32, #tpu.memory_space<vmem>>, vector<8x800xf32>
    tpu.vector_store %arg9[%c144, %c0_21], %57 {strides = array<i32>} : memref<216x800xf32, #tpu.memory_space<vmem>>, vector<8x800xf32>,
    %59 = vector.extract_strided_slice %1 {offsets = [0, 201], sizes = [8, 800], strides = [1, 1]} : vector<8x1100xbf16> to vector<8x800xbf16>
    %60 = arith.extf %59 : vector<8x800xbf16> to vector<8x800xf32>
    %c152 = arith.constant 152 : index
    %c0_22 = arith.constant 0 : index
    %61 = vector.load %arg9[%c152, %c0_22] : memref<216x800xf32, #tpu.memory_space<vmem>>, vector<8x800xf32>
    tpu.vector_store %arg9[%c152, %c0_22], %60 {strides = array<i32>} : memref<216x800xf32, #tpu.memory_space<vmem>>, vector<8x800xf32>,
    %62 = vector.extract_strided_slice %1 {offsets = [0, 202], sizes = [8, 800], strides = [1, 1]} : vector<8x1100xbf16> to vector<8x800xbf16>
    %63 = arith.extf %62 : vector<8x800xbf16> to vector<8x800xf32>
    %c160 = arith.constant 160 : index
    %c0_23 = arith.constant 0 : index
    %64 = vector.load %arg9[%c160, %c0_23] : memref<216x800xf32, #tpu.memory_space<vmem>>, vector<8x800xf32>
    tpu.vector_store %arg9[%c160, %c0_23], %63 {strides = array<i32>} : memref<216x800xf32, #tpu.memory_space<vmem>>, vector<8x800xf32>,
    %65 = vector.extract_strided_slice %1 {offsets = [0, 210], sizes = [8, 800], strides = [1, 1]} : vector<8x1100xbf16> to vector<8x800xbf16>
    %66 = arith.extf %65 : vector<8x800xbf16> to vector<8x800xf32>
    %c168 = arith.constant 168 : index
    %c0_24 = arith.constant 0 : index
    %67 = vector.load %arg9[%c168, %c0_24] : memref<216x800xf32, #tpu.memory_space<vmem>>, vector<8x800xf32>
    tpu.vector_store %arg9[%c168, %c0_24], %66 {strides = array<i32>} : memref<216x800xf32, #tpu.memory_space<vmem>>, vector<8x800xf32>,
    %68 = vector.extract_strided_slice %1 {offsets = [0, 211], sizes = [8, 800], strides = [1, 1]} : vector<8x1100xbf16> to vector<8x800xbf16>
    %69 = arith.extf %68 : vector<8x800xbf16> to vector<8x800xf32>
    %c176 = arith.constant 176 : index
    %c0_25 = arith.constant 0 : index
    %70 = vector.load %arg9[%c176, %c0_25] : memref<216x800xf32, #tpu.memory_space<vmem>>, vector<8x800xf32>
    tpu.vector_store %arg9[%c176, %c0_25], %69 {strides = array<i32>} : memref<216x800xf32, #tpu.memory_space<vmem>>, vector<8x800xf32>,
    %71 = vector.extract_strided_slice %1 {offsets = [0, 212], sizes = [8, 800], strides = [1, 1]} : vector<8x1100xbf16> to vector<8x800xbf16>
    %72 = arith.extf %71 : vector<8x800xbf16> to vector<8x800xf32>
    %c184 = arith.constant 184 : index
    %c0_26 = arith.constant 0 : index
    %73 = vector.load %arg9[%c184, %c0_26] : memref<216x800xf32, #tpu.memory_space<vmem>>, vector<8x800xf32>
    tpu.vector_store %arg9[%c184, %c0_26], %72 {strides = array<i32>} : memref<216x800xf32, #tpu.memory_space<vmem>>, vector<8x800xf32>,
    %74 = vector.extract_strided_slice %1 {offsets = [0, 220], sizes = [8, 800], strides = [1, 1]} : vector<8x1100xbf16> to vector<8x800xbf16>
    %75 = arith.extf %74 : vector<8x800xbf16> to vector<8x800xf32>
    %c192 = arith.constant 192 : index
    %c0_27 = arith.constant 0 : index
    %76 = vector.load %arg9[%c192, %c0_27] : memref<216x800xf32, #tpu.memory_space<vmem>>, vector<8x800xf32>
    tpu.vector_store %arg9[%c192, %c0_27], %75 {strides = array<i32>} : memref<216x800xf32, #tpu.memory_space<vmem>>, vector<8x800xf32>,
    %77 = vector.extract_strided_slice %1 {offsets = [0, 221], sizes = [8, 800], strides = [1, 1]} : vector<8x1100xbf16> to vector<8x800xbf16>
    %78 = arith.extf %77 : vector<8x800xbf16> to vector<8x800xf32>
    %c200 = arith.constant 200 : index
    %c0_28 = arith.constant 0 : index
    %79 = vector.load %arg9[%c200, %c0_28] : memref<216x800xf32, #tpu.memory_space<vmem>>, vector<8x800xf32>
    tpu.vector_store %arg9[%c200, %c0_28], %78 {strides = array<i32>} : memref<216x800xf32, #tpu.memory_space<vmem>>, vector<8x800xf32>,
    %80 = vector.extract_strided_slice %1 {offsets = [0, 222], sizes = [8, 800], strides = [1, 1]} : vector<8x1100xbf16> to vector<8x800xbf16>
    %81 = arith.extf %80 : vector<8x800xbf16> to vector<8x800xf32>
    %c208 = arith.constant 208 : index
    %c0_29 = arith.constant 0 : index
    %82 = vector.load %arg9[%c208, %c0_29] : memref<216x800xf32, #tpu.memory_space<vmem>>, vector<8x800xf32>
    tpu.vector_store %arg9[%c208, %c0_29], %81 {strides = array<i32>} : memref<216x800xf32, #tpu.memory_space<vmem>>, vector<8x800xf32>,
    %c0_30 = arith.constant 0 : index
    %c0_31 = arith.constant 0 : index
    %83 = vector.load %arg2[%c0_30, %c0_31] : memref<16x216xbf16, #tpu.memory_space<vmem>>, vector<16x216xbf16>
    %c0_32 = arith.constant 0 : index
    %c0_33 = arith.constant 0 : index
    %84 = vector.load %arg9[%c0_32, %c0_33] : memref<216x800xf32, #tpu.memory_space<vmem>>, vector<216x800xf32>
    %85 = arith.truncf %84 : vector<216x800xf32> to vector<216x800xbf16>
    %cst = arith.constant dense<0.000000e+00> : vector<16x800xf32>
    %86 = tpu.matmul %83, %85, %cst {dimension_numbers = #tpu.dot_dimension_numbers<[1], [0], [0], [1], [0, 0, 1, 1], [], []>} : vector<16x216xbf16>, vector<216x800xbf16>, vector<16x800xf32> -> vector<16x800xf32>
    %c0_34 = arith.constant 0 : index
    %c0_35 = arith.constant 0 : index
    %87 = vector.load %arg5[%c0_34, %c0_35] : memref<1x800xf32, #tpu.memory_space<vmem>>, vector<1x800xf32>
    %c0_36 = arith.constant 0 : index
    %c0_37 = arith.constant 0 : index
    %88 = vector.load %arg3[%c0_36, %c0_37] : memref<16x1xf32, #tpu.memory_space<vmem>>, vector<16x1xf32>
    %c0_38 = arith.constant 0 : index
    %c0_39 = arith.constant 0 : index
    %89 = vector.load %arg4[%c0_38, %c0_39] : memref<16x16xf32, #tpu.memory_space<vmem>>, vector<16x16xf32>
    %90 = vector.broadcast %87 : vector<1x800xf32> to vector<16x800xf32>
    %91 = arith.mulf %86, %90 : vector<16x800xf32>
    %cst_40 = arith.constant dense<0.000000e+00> : vector<16xf32>
    %92 = vector.multi_reduction <add>, %91, %cst_40 [1] : vector<16x800xf32> to vector<16xf32>
    %93 = vector.shape_cast %92 : vector<16xf32> to vector<16x1xf32>
    %cst_41 = arith.constant 5.120000e+02 : f32
    %94 = vector.broadcast %cst_41 : f32 to vector<16x1xf32>
    %95 = arith.mulf %88, %94 : vector<16x1xf32>
    %96 = arith.addf %93, %95 : vector<16x1xf32>
    %cst_42 = arith.constant dense<0.000000e+00> : vector<16x1xf32>
    %97 = tpu.matmul %89, %96, %cst_42 {dimension_numbers = #tpu.dot_dimension_numbers<[1], [0], [0], [1], [0, 0, 1, 1], [], []>} : vector<16x16xf32>, vector<16x1xf32>, vector<16x1xf32> -> vector<16x1xf32>
    %cst_43 = arith.constant 9.765625E-4 : f32
    %98 = vector.broadcast %cst_43 : f32 to vector<16x1xf32>
    %99 = arith.mulf %97, %98 : vector<16x1xf32>
    %100 = arith.subf %99, %88 : vector<16x1xf32>
    %101 = vector.broadcast %100 : vector<16x1xf32> to vector<16x800xf32>
    %102 = arith.subf %86, %101 : vector<16x800xf32>
    %103 = arith.mulf %102, %102 : vector<16x800xf32>
    %104 = vector.broadcast %87 : vector<1x800xf32> to vector<16x800xf32>
    %105 = arith.mulf %103, %104 : vector<16x800xf32>
    %cst_44 = arith.constant dense<0.000000e+00> : vector<16xf32>
    %106 = vector.multi_reduction <add>, %105, %cst_44 [1] : vector<16x800xf32> to vector<16xf32>
    %107 = vector.shape_cast %106 : vector<16xf32> to vector<16x1xf32>
    %cst_45 = arith.constant dense<0.000000e+00> : vector<16x1xf32>
    %108 = tpu.matmul %89, %107, %cst_45 {dimension_numbers = #tpu.dot_dimension_numbers<[1], [0], [0], [1], [0, 0, 1, 1], [], []>} : vector<16x16xf32>, vector<16x1xf32>, vector<16x1xf32> -> vector<16x1xf32>
    %cst_46 = arith.constant 9.765625E-4 : f32
    %109 = vector.broadcast %cst_46 : f32 to vector<16x1xf32>
    %110 = arith.mulf %108, %109 : vector<16x1xf32>
    %cst_47 = arith.constant 9.99999974E-6 : f32
    %111 = vector.broadcast %cst_47 : f32 to vector<16x1xf32>
    %112 = arith.addf %110, %111 : vector<16x1xf32>
    %113 = math.rsqrt %112 : vector<16x1xf32>
    %c0_48 = arith.constant 0 : index
    %c0_49 = arith.constant 0 : index
    %c0_50 = arith.constant 0 : index
    %114 = vector.load %arg6[%c0_48, %c0_49, %c0_50] : memref<1x16x1xf32, #tpu.memory_space<vmem>>, vector<1x16x1xf32>
    %115 = vector.shape_cast %114 : vector<1x16x1xf32> to vector<16x1xf32>
    %116 = arith.mulf %113, %115 : vector<16x1xf32>
    %117 = vector.broadcast %116 : vector<16x1xf32> to vector<16x800xf32>
    %118 = arith.mulf %102, %117 : vector<16x800xf32>
    %c0_51 = arith.constant 0 : index
    %c0_52 = arith.constant 0 : index
    %c0_53 = arith.constant 0 : index
    %119 = vector.load %arg7[%c0_51, %c0_52, %c0_53] : memref<1x16x1xf32, #tpu.memory_space<vmem>>, vector<1x16x1xf32>
    %120 = vector.shape_cast %119 : vector<1x16x1xf32> to vector<16x1xf32>
    %121 = vector.broadcast %120 : vector<16x1xf32> to vector<16x800xf32>
    %122 = arith.addf %118, %121 : vector<16x800xf32>
    %cst_54 = arith.constant 0.000000e+00 : f32
    %123 = vector.broadcast %cst_54 : f32 to vector<16x800xf32>
    %124 = arith.subf %123, %122 : vector<16x800xf32>
    %125 = math.exp %124 : vector<16x800xf32>
    %cst_55 = arith.constant 1.000000e+00 : f32
    %126 = vector.broadcast %cst_55 : f32 to vector<16x800xf32>
    %127 = arith.addf %126, %125 : vector<16x800xf32>
    %128 = tpu.reciprocal %127 {approx = true} : vector<16x800xf32> -> vector<16x800xf32>
    %129 = arith.mulf %122, %128 : vector<16x800xf32>
    %c0_56 = arith.constant 0 : index
    %c0_57 = arith.constant 0 : index
    %c0_58 = arith.constant 0 : index
    %130 = vector.load %arg8[%c0_56, %c0_57, %c0_58] : memref<1x16x800xf32, #tpu.memory_space<vmem>>, vector<1x16x800xf32>
    %131 = vector.shape_cast %130 : vector<1x16x800xf32> to vector<16x800xf32>
    %132 = vector.shape_cast %129 : vector<16x800xf32> to vector<1x16x800xf32>
    tpu.vector_store %arg8[%c0_56, %c0_57, %c0_58], %132 {strides = array<i32>} : memref<1x16x800xf32, #tpu.memory_space<vmem>>, vector<1x16x800xf32>,
    return
  }
  func.func @transform_0(%arg0: i32) -> (i32, i32, i32) {
    %c0_i32 = arith.constant 0 : i32
    %c0_i32_0 = arith.constant 0 : i32
    %c0_i32_1 = arith.constant 0 : i32
    return %arg0, %c0_i32, %c0_i32_0 : i32, i32, i32
  }
  func.func @transform_1(%arg0: i32) -> (i32, i32) {
    %c0_i32 = arith.constant 0 : i32
    %c0_i32_0 = arith.constant 0 : i32
    %c0_i32_1 = arith.constant 0 : i32
    return %c0_i32, %c0_i32_0 : i32, i32
  }
  func.func @transform_2(%arg0: i32) -> (i32, i32) {
    %c0_i32 = arith.constant 0 : i32
    %c0_i32_0 = arith.constant 0 : i32
    %c0_i32_1 = arith.constant 0 : i32
    return %c0_i32, %c0_i32_0 : i32, i32
  }
  func.func @transform_3(%arg0: i32) -> (i32, i32) {
    %c0_i32 = arith.constant 0 : i32
    %c0_i32_0 = arith.constant 0 : i32
    %c0_i32_1 = arith.constant 0 : i32
    return %c0_i32, %c0_i32_0 : i32, i32
  }
  func.func @transform_4(%arg0: i32) -> (i32, i32) {
    %c0_i32 = arith.constant 0 : i32
    %c0_i32_0 = arith.constant 0 : i32
    %c0_i32_1 = arith.constant 0 : i32
    return %c0_i32, %c0_i32_0 : i32, i32
  }
  func.func @transform_5(%arg0: i32) -> (i32, i32, i32) {
    %c0_i32 = arith.constant 0 : i32
    %c0_i32_0 = arith.constant 0 : i32
    %c0_i32_1 = arith.constant 0 : i32
    return %arg0, %c0_i32, %c0_i32_0 : i32, i32, i32
  }
  func.func @transform_6(%arg0: i32) -> (i32, i32, i32) {
    %c0_i32 = arith.constant 0 : i32
    %c0_i32_0 = arith.constant 0 : i32
    %c0_i32_1 = arith.constant 0 : i32
    return %arg0, %c0_i32, %c0_i32_0 : i32, i32, i32
  }
  func.func @transform_7(%arg0: i32) -> (i32, i32, i32) {
    %c0_i32 = arith.constant 0 : i32
    %c0_i32_0 = arith.constant 0 : i32
    %c0_i32_1 = arith.constant 0 : i32
    return %arg0, %c0_i32, %c0_i32_0 : i32, i32, i32
  }
}

</mosaic_0001>

<llo_original>
// kernel: tpu_custom_call.1
$region0: #{tpu_custom_call.1}
  #allocation0 [shape = 'u32[]', space=smem, size = 0x4, offset = 0x4, fixed_abs, tag = 'smem constant byte address 0x4 - core index']
  #allocation1 [shape = 'u32[144,128]{1,0:T(1,128)}', space=vmem, size = 0x12000, scoped, tag = 'internal scratch']
  #allocation2 [shape = 'f32[216,800]{1,0:T(8,128)}', space=vmem, size = 0xbd000, scoped, tag = 'scratch operand']
  %s0 = inlined_call_operand.vmem [shape: bf16[2,8,1100], index: 0, kind: input, shape index: {}]
  %s1 = inlined_call_operand.vmem [shape: bf16[16,216], index: 1, kind: input, shape index: {}]
  %s2 = inlined_call_operand.vmem [shape: f32[16,1], index: 2, kind: input, shape index: {}]
  %s3 = inlined_call_operand.hbm [shape: f32[16,16], index: 3, kind: input, shape index: {}]
  %s4 = inlined_call_operand.vmem [shape: f32[1,800], index: 4, kind: input, shape index: {}]
  %s5 = inlined_call_operand.vmem [shape: f32[2,16,1], index: 5, kind: input, shape index: {}]
  %s6 = inlined_call_operand.vmem [shape: f32[2,16,1], index: 6, kind: input, shape index: {}]
  %s7 = inlined_call_operand.hbm [shape: f32[2,16,800], index: 7, kind: output, shape index: {}]
  %s8 = sld [smem:[#allocation0]]
  $region65: #{tpu_custom_call.1} parent=0
    _
  %s10 = ssub.s32 1, %s8
  %s11 = scalar_select 0, %s10, %s8
  $region1: #{tpu_custom_call.1} parent=0
    #allocation3 [shape = 'u8[8192]{0}', space=vmem, size = 0x2000, scoped, tag = 'input window, operand 3, single buffered']
    #allocation4 [shape = 's32[2]{0}', space=sflag, size = 0x8, scoped, tag = 'scoped memory for tpu_custom_call.1']
    #allocation5 [shape = 's32[2]{0}', space=sflag, size = 0x8, scoped, tag = 'scoped memory for tpu_custom_call.1']
    #allocation6 [shape = 'u8[114688]{0}', space=vmem, size = 0x1c000, scoped, tag = 'output window, operand 0']
    %12 = vsyncpa [#allocation4], 0
    %13 = vsyncpa [#allocation5], 0
    %s14 = scalar_lea.sflag [#allocation5], 1
    %15 = vsyncpa %s14, 0
    loop: start=0, step=1, limit=4
    $region2: #{tpu_custom_call.1} parent=1 // loop_pre_header
      _
    $region3: #{tpu_custom_call.1} parent=1 // loop_header
      %s17 = sphi 0, %s21
      %p18 = scmp.ge.s32.totalorder %s17, 4
      %s27 = sphi 0, %s29
      %s30 = sphi 0, %s27
      %s31 = sphi 0, %s30
      %s47 = sphi 0, %s31
      %s51 = sphi 0, %s51
      %s53 = sphi 0, %s51
      %s54 = sphi 0, %s53
      %s68 = sphi 0, %s54
      %s72 = sphi 0, %s72
      %s74 = sphi 0, %s72
      %s75 = sphi 0, %s74
      %s89 = sphi 0, %s75
      %s93 = sphi 0, %s93
      %s95 = sphi 0, %s93
      %s96 = sphi 0, %s95
      %s110 = sphi 0, %s96
      %s114 = sphi 0, %s114
      %s116 = sphi 0, %s114
      %s117 = sphi 0, %s116
      %s131 = sphi 0, %s117
      %s137 = sphi 0, %s139
      %s140 = sphi 0, %s137
      %s141 = sphi 0, %s140
      %s157 = sphi 0, %s141
      %s163 = sphi 0, %s165
      %s166 = sphi 0, %s163
      %s167 = sphi 0, %s166
      %s183 = sphi 0, %s167
      %s189 = sphi 0, %s191
      %s192 = sphi 0, %s189
      %s193 = sphi 0, %s192
      %s209 = sphi 0, %s193
    $region4: #{tpu_custom_call.1} parent=1 // loop_header_branch
      %20 = sbr.rel (%p18) target = $region8
    $region5: #{tpu_custom_call.1} parent=1 // loop_body
      %s22 = ssub.s32 %s17, 1
      %s23 = ssub.s32 %s17, 2
      %s24 = sadd.s32 %s17, 1
      %s25 = ssub.s32 %s17, %s24
      %p26 = scmp.eq.s32.totalorder %s25, 0
      %s28 = sadd.s32 %s27, 1
      %s29 = scalar_select %p26, %s27, %s28
      %p32 = pneg %p26
      %p33 = scmp.eq.s32.totalorder %s17, 1
      %p34 = por %p32, %p33
      %p35 = scmp.ne.s32.totalorder %s27, %s30
      %p36 = scmp.eq.s32.totalorder %s17, 0
      %p37 = por %p35, %p36
      %p38 = scmp.ne.s32.totalorder %s27, %s30
      %p39 = scmp.eq.s32.totalorder %s22, 1
      %p40 = por %p38, %p39
      %p41 = scmp.ne.s32.totalorder %s30, %s31
      %p42 = scmp.eq.s32.totalorder %s22, 0
      %p43 = por %p41, %p42
      %p44 = scmp.ne.s32.totalorder %s30, %s31
      %p45 = scmp.eq.s32.totalorder %s23, 1
      %p46 = por %p44, %p45
      %p48 = scmp.ne.s32.totalorder %s31, %s47
      %p49 = scmp.eq.s32.totalorder %s23, 0
      %p50 = por %p48, %p49
      %s52 = sadd.s32 %s51, 1
      %p55 = scmp.eq.s32.totalorder %s17, 1
      %p56 = scmp.ne.s32.totalorder %s51, %s53
      %p57 = scmp.eq.s32.totalorder %s17, 0
      %p58 = por %p56, %p57
      %p59 = scmp.ne.s32.totalorder %s51, %s53
      %p60 = scmp.eq.s32.totalorder %s22, 1
      %p61 = por %p59, %p60
      %p62 = scmp.ne.s32.totalorder %s53, %s54
      %p63 = scmp.eq.s32.totalorder %s22, 0
      %p64 = por %p62, %p63
      %p65 = scmp.ne.s32.totalorder %s53, %s54
      %p66 = scmp.eq.s32.totalorder %s23, 1
      %p67 = por %p65, %p66
      %p69 = scmp.ne.s32.totalorder %s54, %s68
      %p70 = scmp.eq.s32.totalorder %s23, 0
      %p71 = por %p69, %p70
      %s73 = sadd.s32 %s72, 1
      %p76 = scmp.eq.s32.totalorder %s17, 1
      %p77 = scmp.ne.s32.totalorder %s72, %s74
      %p78 = scmp.eq.s32.totalorder %s17, 0
      %p79 = por %p77, %p78
      %p80 = scmp.ne.s32.totalorder %s72, %s74
      %p81 = scmp.eq.s32.totalorder %s22, 1
      %p82 = por %p80, %p81
      %p83 = scmp.ne.s32.totalorder %s74, %s75
      %p84 = scmp.eq.s32.totalorder %s22, 0
      %p85 = por %p83, %p84
      %p86 = scmp.ne.s32.totalorder %s74, %s75
      %p87 = scmp.eq.s32.totalorder %s23, 1
      %p88 = por %p86, %p87
      %p90 = scmp.ne.s32.totalorder %s75, %s89
      %p91 = scmp.eq.s32.totalorder %s23, 0
      %p92 = por %p90, %p91
      %s94 = sadd.s32 %s93, 1
      %p97 = scmp.eq.s32.totalorder %s17, 1
      %p98 = scmp.ne.s32.totalorder %s93, %s95
      %p99 = scmp.eq.s32.totalorder %s17, 0
      %p100 = por %p98, %p99
      %p101 = scmp.ne.s32.totalorder %s93, %s95
      %p102 = scmp.eq.s32.totalorder %s22, 1
      %p103 = por %p101, %p102
      %p104 = scmp.ne.s32.totalorder %s95, %s96
      %p105 = scmp.eq.s32.totalorder %s22, 0
      %p106 = por %p104, %p105
      %p107 = scmp.ne.s32.totalorder %s95, %s96
      %p108 = scmp.eq.s32.totalorder %s23, 1
      %p109 = por %p107, %p108
      %p111 = scmp.ne.s32.totalorder %s96, %s110
      %p112 = scmp.eq.s32.totalorder %s23, 0
      %p113 = por %p111, %p112
      %s115 = sadd.s32 %s114, 1
      %p118 = scmp.eq.s32.totalorder %s17, 1
      %p119 = scmp.ne.s32.totalorder %s114, %s116
      %p120 = scmp.eq.s32.totalorder %s17, 0
      %p121 = por %p119, %p120
      %p122 = scmp.ne.s32.totalorder %s114, %s116
      %p123 = scmp.eq.s32.totalorder %s22, 1
      %p124 = por %p122, %p123
      %p125 = scmp.ne.s32.totalorder %s116, %s117
      %p126 = scmp.eq.s32.totalorder %s22, 0
      %p127 = por %p125, %p126
      %p128 = scmp.ne.s32.totalorder %s116, %s117
      %p129 = scmp.eq.s32.totalorder %s23, 1
      %p130 = por %p128, %p129
      %p132 = scmp.ne.s32.totalorder %s117, %s131
      %p133 = scmp.eq.s32.totalorder %s23, 0
      %p134 = por %p132, %p133
      %s135 = ssub.s32 %s17, %s24
      %p136 = scmp.eq.s32.totalorder %s135, 0
      %s138 = sadd.s32 %s137, 1
      %s139 = scalar_select %p136, %s137, %s138
      %p142 = pneg %p136
      %p143 = scmp.eq.s32.totalorder %s17, 1
      %p144 = por %p142, %p143
      %p145 = scmp.ne.s32.totalorder %s137, %s140
      %p146 = scmp.eq.s32.totalorder %s17, 0
      %p147 = por %p145, %p146
      %p148 = scmp.ne.s32.totalorder %s137, %s140
      %p149 = scmp.eq.s32.totalorder %s22, 1
      %p150 = por %p148, %p149
      %p151 = scmp.ne.s32.totalorder %s140, %s141
      %p152 = scmp.eq.s32.totalorder %s22, 0
      %p153 = por %p151, %p152
      %p154 = scmp.ne.s32.totalorder %s140, %s141
      %p155 = scmp.eq.s32.totalorder %s23, 1
      %p156 = por %p154, %p155
      %p158 = scmp.ne.s32.totalorder %s141, %s157
      %p159 = scmp.eq.s32.totalorder %s23, 0
      %p160 = por %p158, %p159
      %s161 = ssub.s32 %s17, %s24
      %p162 = scmp.eq.s32.totalorder %s161, 0
      %s164 = sadd.s32 %s163, 1
      %s165 = scalar_select %p162, %s163, %s164
      %p168 = pneg %p162
      %p169 = scmp.eq.s32.totalorder %s17, 1
      %p170 = por %p168, %p169
      %p171 = scmp.ne.s32.totalorder %s163, %s166
      %p172 = scmp.eq.s32.totalorder %s17, 0
      %p173 = por %p171, %p172
      %p174 = scmp.ne.s32.totalorder %s163, %s166
      %p175 = scmp.eq.s32.totalorder %s22, 1
      %p176 = por %p174, %p175
      %p177 = scmp.ne.s32.totalorder %s166, %s167
      %p178 = scmp.eq.s32.totalorder %s22, 0
      %p179 = por %p177, %p178
      %p180 = scmp.ne.s32.totalorder %s166, %s167
      %p181 = scmp.eq.s32.totalorder %s23, 1
      %p182 = por %p180, %p181
      %p184 = scmp.ne.s32.totalorder %s167, %s183
      %p185 = scmp.eq.s32.totalorder %s23, 0
      %p186 = por %p184, %p185
      %s187 = ssub.s32 %s17, %s24
      %p188 = scmp.eq.s32.totalorder %s187, 0
      %s190 = sadd.s32 %s189, 1
      %s191 = scalar_select %p188, %s189, %s190
      %p194 = pneg %p188
      %p195 = scmp.eq.s32.totalorder %s17, 1
      %p196 = por %p194, %p195
      %p197 = scmp.ne.s32.totalorder %s189, %s192
      %p198 = scmp.eq.s32.totalorder %s17, 0
      %p199 = por %p197, %p198
      %p200 = scmp.ne.s32.totalorder %s189, %s192
      %p201 = scmp.eq.s32.totalorder %s22, 1
      %p202 = por %p200, %p201
      %p203 = scmp.ne.s32.totalorder %s192, %s193
      %p204 = scmp.eq.s32.totalorder %s22, 0
      %p205 = por %p203, %p204
      %p206 = scmp.ne.s32.totalorder %s192, %s193
      %p207 = scmp.eq.s32.totalorder %s23, 1
      %p208 = por %p206, %p207
      %p210 = scmp.ne.s32.totalorder %s193, %s209
      %p211 = scmp.eq.s32.totalorder %s23, 0
      %p212 = por %p210, %p211
      %p213 = scmp.le.s32.totalorder 1, %s17
      %p214 = scmp.lt.s32.totalorder %s17, 3
      %p215 = pnand %p213, %p214
      %p216 = pneg %p215
      // Predicated region
      $region9: #{tpu_custom_call.1} parent=5 // pred_check
        _
      $region10: #{tpu_custom_call.1} parent=5 // pred_check_branch
        %218 = sbr.rel (%p215) target = $region12
      $region11: #{tpu_custom_call.1} parent=5 // pred_region
        %s219 = ssub.s32 %s17, 1
        // Predicated region
        $region13: #{tpu_custom_call.1} parent=11 // pred_check
          %p220 = pneg %p64
        $region14: #{tpu_custom_call.1} parent=11 // pred_check_branch
          %222 = sbr.rel (%p220) target = $region16
        $region15: #{tpu_custom_call.1} parent=11 // pred_region
          _
        $region16: #{tpu_custom_call.1} parent=11 // pred_fallthru
          _
        // Predicated region
        $region17: #{tpu_custom_call.1} parent=11 // pred_check
          %p223 = pneg %p85
        $region18: #{tpu_custom_call.1} parent=11 // pred_check_branch
          %225 = sbr.rel (%p223) target = $region20
        $region19: #{tpu_custom_call.1} parent=11 // pred_region
          _
        $region20: #{tpu_custom_call.1} parent=11 // pred_fallthru
          _
        // Predicated region
        $region21: #{tpu_custom_call.1} parent=11 // pred_check
          %p226 = pneg %p106
        $region22: #{tpu_custom_call.1} parent=11 // pred_check_branch
          %228 = sbr.rel (%p226) target = $region24
        $region23: #{tpu_custom_call.1} parent=11 // pred_region
          %s230 = ssub.s32 256, 256
          %231 = vsyncadd [#allocation4], %s230
          %s232 = sshll.u32 [#allocation3], 4
          %s233 = int_to_ptr.vmem [resolvable:$true] %s232
          %238 = dma.hbm_to_vmem [thread:$0]  %s3, 256, %s233, [#allocation4], 128, 128, 8
        $region24: #{tpu_custom_call.1} parent=11 // pred_fallthru
          _
        // Predicated region
        $region25: #{tpu_custom_call.1} parent=11 // pred_check
          %p239 = pneg %p127
        $region26: #{tpu_custom_call.1} parent=11 // pred_check_branch
          %241 = sbr.rel (%p239) target = $region28
        $region27: #{tpu_custom_call.1} parent=11 // pred_region
          _
        $region28: #{tpu_custom_call.1} parent=11 // pred_fallthru
          _
      $region12: #{tpu_custom_call.1} parent=5 // pred_fallthru
        _
      %p242 = scmp.lt.s32.totalorder %s17, 2
      // Predicated region
      $region29: #{tpu_custom_call.1} parent=5 // pred_check
        %p243 = pneg %p242
      $region30: #{tpu_custom_call.1} parent=5 // pred_check_branch
        %245 = sbr.rel (%p243) target = $region32
      $region31: #{tpu_custom_call.1} parent=5 // pred_region
        // Predicated region
        $region33: #{tpu_custom_call.1} parent=31 // pred_check
          %p246 = pneg %p37
        $region34: #{tpu_custom_call.1} parent=31 // pred_check_branch
          %248 = sbr.rel (%p246) target = $region36
        $region35: #{tpu_custom_call.1} parent=31 // pred_region
          %p249 = scmp.lt.s32.totalorder %s17, 1
          %s250 = scalar_select %p249, %s17, 1
          %s251 = smul.addr %s250, 9
          %s252 = smul.addr %s251, 4
          %s253 = scalar_lea.vmem %s0, %s252
        $region36: #{tpu_custom_call.1} parent=31 // pred_fallthru
          _
        // Predicated region
        $region37: #{tpu_custom_call.1} parent=31 // pred_check
          %p254 = pneg %p147
        $region38: #{tpu_custom_call.1} parent=31 // pred_check_branch
          %256 = sbr.rel (%p254) target = $region40
        $region39: #{tpu_custom_call.1} parent=31 // pred_region
          %p257 = scmp.lt.s32.totalorder %s17, 1
          %s258 = scalar_select %p257, %s17, 1
          %s259 = smul.addr %s258, 2
          %s260 = smul.addr %s259, 8
          %s261 = scalar_lea.vmem %s5, %s260
        $region40: #{tpu_custom_call.1} parent=31 // pred_fallthru
          _
        // Predicated region
        $region41: #{tpu_custom_call.1} parent=31 // pred_check
          %p262 = pneg %p173
        $region42: #{tpu_custom_call.1} parent=31 // pred_check_branch
          %264 = sbr.rel (%p262) target = $region44
        $region43: #{tpu_custom_call.1} parent=31 // pred_region
          %p265 = scmp.lt.s32.totalorder %s17, 1
          %s266 = scalar_select %p265, %s17, 1
          %s267 = smul.addr %s266, 2
          %s268 = smul.addr %s267, 8
          %s269 = scalar_lea.vmem %s6, %s268
        $region44: #{tpu_custom_call.1} parent=31 // pred_fallthru
          _
      $region32: #{tpu_custom_call.1} parent=5 // pred_fallthru
        _
      %p270 = scmp.le.s32.totalorder 1, %s17
      %p271 = scmp.lt.s32.totalorder %s17, 3
      %p272 = pnand %p270, %p271
      %p273 = pneg %p272
      // Predicated region
      $region45: #{tpu_custom_call.1} parent=5 // pred_check
        _
      $region46: #{tpu_custom_call.1} parent=5 // pred_check_branch
        %275 = sbr.rel (%p272) target = $region48
      $region47: #{tpu_custom_call.1} parent=5 // pred_region
        %s276 = ssub.s32 %s17, 1
        // Predicated region
        $region49: #{tpu_custom_call.1} parent=47 // pred_check
          %p277 = pneg %p106
        $region50: #{tpu_custom_call.1} parent=47 // pred_check_branch
          %279 = sbr.rel (%p277) target = $region52
        $region51: #{tpu_custom_call.1} parent=47 // pred_region
          %280 = dma.done [#allocation4], 256
        $region52: #{tpu_custom_call.1} parent=47 // pred_fallthru
          _
        %p281 = scmp.lt.s32.totalorder %s22, 1
        %s282 = scalar_select %p281, %s22, 1
        %s283 = smul.addr %s282, 9
        %s284 = smul.addr %s283, 4
        %s285 = scalar_lea.vmem %s0, %s284
        %p286 = pneg %p43
        %p287 = pneg %p40
        %p288 = pneg %p64
        %p289 = pneg %p61
        %p290 = pneg %p85
        %p291 = pneg %p82
        %p292 = pneg %p106
        %p293 = pneg %p103
        %p294 = pneg %p127
        %p295 = pneg %p124
        %p296 = scmp.lt.s32.totalorder %s22, 1
        %s297 = scalar_select %p296, %s22, 1
        %s298 = smul.addr %s297, 2
        %s299 = smul.addr %s298, 8
        %s300 = scalar_lea.vmem %s5, %s299
        %p301 = pneg %p153
        %p302 = pneg %p150
        %p303 = scmp.lt.s32.totalorder %s22, 1
        %s304 = scalar_select %p303, %s22, 1
        %s305 = smul.addr %s304, 2
        %s306 = smul.addr %s305, 8
        %s307 = scalar_lea.vmem %s6, %s306
        %p308 = pneg %p179
        %p309 = pneg %p176
        %p310 = pneg %p205
        %p311 = pneg %p202
        %s312 = sand.u32 %s192, 1
        %s313 = scalar_lea.sflag [#allocation5], %s312
        %s314 = sand.u32 %s192, 1
        %s315 = smul.addr %s314, 112
        %s316 = scalar_lea.vmem [#allocation6], %s315
        %p317 = scmp.lt.s32.totalorder %s22, 1
        %s318 = scalar_select %p317, %s22, 1
        %s319 = smul.addr %s318, 9
        %s320 = smul.addr %s319, 4
        %s321 = scalar_lea.vmem %s0, %s320
        %p322 = scmp.lt.s32.totalorder %s22, 1
        %s323 = scalar_select %p322, %s22, 1
        %s324 = smul.addr %s323, 2
        %s325 = smul.addr %s324, 8
        %s326 = scalar_lea.vmem %s5, %s325
        %p327 = scmp.lt.s32.totalorder %s22, 1
        %s328 = scalar_select %p327, %s22, 1
        %s329 = smul.addr %s328, 2
        %s330 = smul.addr %s329, 8
        %s331 = scalar_lea.vmem %s6, %s330
        %v333 = vld [vmem:[%s321] sm:$0xff]
        %v334 = vld [vmem:[%s321 + $0x8] sm:$0xff]
        %v335 = vld [vmem:[%s321 + $0x10] sm:$0xff]
        %v336 = vld [vmem:[%s321 + $0x18] sm:$0xff]
        %v337 = vunpack.c.l.bf16 %v333
        %v338 = vunpack.c.h.bf16 %v333
        %v339 = vunpack.c.l.bf16 %v334
        %v340 = vunpack.c.h.bf16 %v334
        %v341 = vunpack.c.l.bf16 %v335
        %v342 = vunpack.c.h.bf16 %v335
        %v343 = vunpack.c.l.bf16 %v336
        %344 = vst [vmem:[#allocation2] sm:$0xff] %v337
        %345 = vst [vmem:[#allocation2 + $0x8] sm:$0xff] %v338
        %346 = vst [vmem:[#allocation2 + $0x10] sm:$0xff] %v339
        %347 = vst [vmem:[#allocation2 + $0x18] sm:$0xff] %v340
        %348 = vst [vmem:[#allocation2 + $0x20] sm:$0xff] %v341
        %349 = vst [vmem:[#allocation2 + $0x28] sm:$0xff] %v342
        %vm350 = vcmask 261120
        %351 = vst.msk [vmem:[#allocation2 + $0x30] sm:$0xff] %vm350, %v343
        %359 = vrot.lane.b32.xlu0 %v337, 127
        %v360 = vpop.permute.xlu0 %359
        %361 = vrot.lane.b32.xlu0 %v338, 127
        %v362 = vpop.permute.xlu0 %361
        %363 = vrot.lane.b32.xlu0 %v339, 127
        %v364 = vpop.permute.xlu0 %363
        %365 = vrot.lane.b32.xlu0 %v340, 127
        %v366 = vpop.permute.xlu0 %365
        %367 = vrot.lane.b32.xlu0 %v341, 127
        %v368 = vpop.permute.xlu0 %367
        %369 = vrot.lane.b32.xlu0 %v342, 127
        %v370 = vpop.permute.xlu0 %369
        %371 = vrot.lane.b32.xlu0 %v343, 127
        %v372 = vpop.permute.xlu0 %371
        %vm373 = vcmask 1039360
        %v374 = vsel %vm373, %v360, %v362
        %v375 = vsel %vm373, %v362, %v364
        %v376 = vsel %vm373, %v364, %v366
        %v377 = vsel %vm373, %v366, %v368
        %v378 = vsel %vm373, %v368, %v370
        %v379 = vsel %vm373, %v370, %v372
        %387 = vst [vmem:[#allocation2 + $0x38] sm:$0xff] %v374
        %388 = vst [vmem:[#allocation2 + $0x40] sm:$0xff] %v375
        %389 = vst [vmem:[#allocation2 + $0x48] sm:$0xff] %v376
        %390 = vst [vmem:[#allocation2 + $0x50] sm:$0xff] %v377
        %391 = vst [vmem:[#allocation2 + $0x58] sm:$0xff] %v378
        %392 = vst [vmem:[#allocation2 + $0x60] sm:$0xff] %v379
        %393 = vst.msk [vmem:[#allocation2 + $0x68] sm:$0xff] %vm350, %v372
        %394 = vrot.lane.b32.xlu0 %v337, 126
        %v395 = vpop.permute.xlu0 %394
        %396 = vrot.lane.b32.xlu0 %v338, 126
        %v397 = vpop.permute.xlu0 %396
        %398 = vrot.lane.b32.xlu0 %v339, 126
        %v399 = vpop.permute.xlu0 %398
        %400 = vrot.lane.b32.xlu0 %v340, 126
        %v401 = vpop.permute.xlu0 %400
        %402 = vrot.lane.b32.xlu0 %v341, 126
        %v403 = vpop.permute.xlu0 %402
        %404 = vrot.lane.b32.xlu0 %v342, 126
        %v405 = vpop.permute.xlu0 %404
        %406 = vrot.lane.b32.xlu0 %v343, 126
        %v407 = vpop.permute.xlu0 %406
        %vm408 = vcmask 1031168
        %v409 = vsel %vm408, %v395, %v397
        %v410 = vsel %vm408, %v397, %v399
        %v411 = vsel %vm408, %v399, %v401
        %v412 = vsel %vm408, %v401, %v403
        %v413 = vsel %vm408, %v403, %v405
        %v414 = vsel %vm408, %v405, %v407
        %422 = vst [vmem:[#allocation2 + $0x70] sm:$0xff] %v409
        %423 = vst [vmem:[#allocation2 + $0x78] sm:$0xff] %v410
        %424 = vst [vmem:[#allocation2 + $0x80] sm:$0xff] %v411
        %425 = vst [vmem:[#allocation2 + $0x88] sm:$0xff] %v412
        %426 = vst [vmem:[#allocation2 + $0x90] sm:$0xff] %v413
        %427 = vst [vmem:[#allocation2 + $0x98] sm:$0xff] %v414
        %428 = vst.msk [vmem:[#allocation2 + $0xa0] sm:$0xff] %vm350, %v407
        %429 = vrot.lane.b32.xlu0 %v337, 118
        %v430 = vpop.permute.xlu0 %429
        %431 = vrot.lane.b32.xlu0 %v338, 118
        %v432 = vpop.permute.xlu0 %431
        %433 = vrot.lane.b32.xlu0 %v339, 118
        %v434 = vpop.permute.xlu0 %433
        %435 = vrot.lane.b32.xlu0 %v340, 118
        %v436 = vpop.permute.xlu0 %435
        %437 = vrot.lane.b32.xlu0 %v341, 118
        %v438 = vpop.permute.xlu0 %437
        %439 = vrot.lane.b32.xlu0 %v342, 118
        %v440 = vpop.permute.xlu0 %439
        %441 = vrot.lane.b32.xlu0 %v343, 118
        %v442 = vpop.permute.xlu0 %441
        %vm443 = vcmask 965632
        %v444 = vsel %vm443, %v430, %v432
        %v445 = vsel %vm443, %v432, %v434
        %v446 = vsel %vm443, %v434, %v436
        %v447 = vsel %vm443, %v436, %v438
        %v448 = vsel %vm443, %v438, %v440
        %v449 = vsel %vm443, %v440, %v442
        %457 = vst [vmem:[#allocation2 + $0xa8] sm:$0xff] %v444
        %458 = vst [vmem:[#allocation2 + $0xb0] sm:$0xff] %v445
        %459 = vst [vmem:[#allocation2 + $0xb8] sm:$0xff] %v446
        %460 = vst [vmem:[#allocation2 + $0xc0] sm:$0xff] %v447
        %461 = vst [vmem:[#allocation2 + $0xc8] sm:$0xff] %v448
        %462 = vst [vmem:[#allocation2 + $0xd0] sm:$0xff] %v449
        %463 = vst.msk [vmem:[#allocation2 + $0xd8] sm:$0xff] %vm350, %v442
        %464 = vrot.lane.b32.xlu0 %v337, 117
        %v465 = vpop.permute.xlu0 %464
        %466 = vrot.lane.b32.xlu0 %v338, 117
        %v467 = vpop.permute.xlu0 %466
        %468 = vrot.lane.b32.xlu0 %v339, 117
        %v469 = vpop.permute.xlu0 %468
        %470 = vrot.lane.b32.xlu0 %v340, 117
        %v471 = vpop.permute.xlu0 %470
        %472 = vrot.lane.b32.xlu0 %v341, 117
        %v473 = vpop.permute.xlu0 %472
        %474 = vrot.lane.b32.xlu0 %v342, 117
        %v475 = vpop.permute.xlu0 %474
        %476 = vrot.lane.b32.xlu0 %v343, 117
        %v477 = vpop.permute.xlu0 %476
        %vm478 = vcmask 957440
        %v479 = vsel %vm478, %v465, %v467
        %v480 = vsel %vm478, %v467, %v469
        %v481 = vsel %vm478, %v469, %v471
        %v482 = vsel %vm478, %v471, %v473
        %v483 = vsel %vm478, %v473, %v475
        %v484 = vsel %vm478, %v475, %v477
        %492 = vst [vmem:[#allocation2 + $0xe0] sm:$0xff] %v479
        %493 = vst [vmem:[#allocation2 + $0xe8] sm:$0xff] %v480
        %494 = vst [vmem:[#allocation2 + $0xf0] sm:$0xff] %v481
        %495 = vst [vmem:[#allocation2 + $0xf8] sm:$0xff] %v482
        %496 = vst [vmem:[#allocation2 + $0x100] sm:$0xff] %v483
        %497 = vst [vmem:[#allocation2 + $0x108] sm:$0xff] %v484
        %498 = vst.msk [vmem:[#allocation2 + $0x110] sm:$0xff] %vm350, %v477
        %499 = vrot.lane.b32.xlu0 %v337, 116
        %v500 = vpop.permute.xlu0 %499
        %501 = vrot.lane.b32.xlu0 %v338, 116
        %v502 = vpop.permute.xlu0 %501
        %503 = vrot.lane.b32.xlu0 %v339, 116
        %v504 = vpop.permute.xlu0 %503
        %505 = vrot.lane.b32.xlu0 %v340, 116
        %v506 = vpop.permute.xlu0 %505
        %507 = vrot.lane.b32.xlu0 %v341, 116
        %v508 = vpop.permute.xlu0 %507
        %509 = vrot.lane.b32.xlu0 %v342, 116
        %v510 = vpop.permute.xlu0 %509
        %511 = vrot.lane.b32.xlu0 %v343, 116
        %v512 = vpop.permute.xlu0 %511
        %vm513 = vcmask 949248
        %v514 = vsel %vm513, %v500, %v502
        %v515 = vsel %vm513, %v502, %v504
        %v516 = vsel %vm513, %v504, %v506
        %v517 = vsel %vm513, %v506, %v508
        %v518 = vsel %vm513, %v508, %v510
        %v519 = vsel %vm513, %v510, %v512
        %527 = vst [vmem:[#allocation2 + $0x118] sm:$0xff] %v514
        %528 = vst [vmem:[#allocation2 + $0x120] sm:$0xff] %v515
        %529 = vst [vmem:[#allocation2 + $0x128] sm:$0xff] %v516
        %530 = vst [vmem:[#allocation2 + $0x130] sm:$0xff] %v517
        %531 = vst [vmem:[#allocation2 + $0x138] sm:$0xff] %v518
        %532 = vst [vmem:[#allocation2 + $0x140] sm:$0xff] %v519
        %533 = vst.msk [vmem:[#allocation2 + $0x148] sm:$0xff] %vm350, %v512
        %534 = vrot.lane.b32.xlu0 %v337, 108
        %v535 = vpop.permute.xlu0 %534
        %536 = vrot.lane.b32.xlu0 %v338, 108
        %v537 = vpop.permute.xlu0 %536
        %538 = vrot.lane.b32.xlu0 %v339, 108
        %v539 = vpop.permute.xlu0 %538
        %540 = vrot.lane.b32.xlu0 %v340, 108
        %v541 = vpop.permute.xlu0 %540
        %542 = vrot.lane.b32.xlu0 %v341, 108
        %v543 = vpop.permute.xlu0 %542
        %544 = vrot.lane.b32.xlu0 %v342, 108
        %v545 = vpop.permute.xlu0 %544
        %546 = vrot.lane.b32.xlu0 %v343, 108
        %v547 = vpop.permute.xlu0 %546
        %vm548 = vcmask 883712
        %v549 = vsel %vm548, %v535, %v537
        %v550 = vsel %vm548, %v537, %v539
        %v551 = vsel %vm548, %v539, %v541
        %v552 = vsel %vm548, %v541, %v543
        %v553 = vsel %vm548, %v543, %v545
        %v554 = vsel %vm548, %v545, %v547
        %562 = vst [vmem:[#allocation2 + $0x150] sm:$0xff] %v549
        %563 = vst [vmem:[#allocation2 + $0x158] sm:$0xff] %v550
        %564 = vst [vmem:[#allocation2 + $0x160] sm:$0xff] %v551
        %565 = vst [vmem:[#allocation2 + $0x168] sm:$0xff] %v552
        %566 = vst [vmem:[#allocation2 + $0x170] sm:$0xff] %v553
        %567 = vst [vmem:[#allocation2 + $0x178] sm:$0xff] %v554
        %568 = vst.msk [vmem:[#allocation2 + $0x180] sm:$0xff] %vm350, %v547
        %569 = vrot.lane.b32.xlu0 %v337, 107
        %v570 = vpop.permute.xlu0 %569
        %571 = vrot.lane.b32.xlu0 %v338, 107
        %v572 = vpop.permute.xlu0 %571
        %573 = vrot.lane.b32.xlu0 %v339, 107
        %v574 = vpop.permute.xlu0 %573
        %575 = vrot.lane.b32.xlu0 %v340, 107
        %v576 = vpop.permute.xlu0 %575
        %577 = vrot.lane.b32.xlu0 %v341, 107
        %v578 = vpop.permute.xlu0 %577
        %579 = vrot.lane.b32.xlu0 %v342, 107
        %v580 = vpop.permute.xlu0 %579
        %581 = vrot.lane.b32.xlu0 %v343, 107
        %v582 = vpop.permute.xlu0 %581
        %vm583 = vcmask 875520
        %v584 = vsel %vm583, %v570, %v572
        %v585 = vsel %vm583, %v572, %v574
        %v586 = vsel %vm583, %v574, %v576
        %v587 = vsel %vm583, %v576, %v578
        %v588 = vsel %vm583, %v578, %v580
        %v589 = vsel %vm583, %v580, %v582
        %597 = vst [vmem:[#allocation2 + $0x188] sm:$0xff] %v584
        %598 = vst [vmem:[#allocation2 + $0x190] sm:$0xff] %v585
        %599 = vst [vmem:[#allocation2 + $0x198] sm:$0xff] %v586
        %600 = vst [vmem:[#allocation2 + $0x1a0] sm:$0xff] %v587
        %601 = vst [vmem:[#allocation2 + $0x1a8] sm:$0xff] %v588
        %602 = vst [vmem:[#allocation2 + $0x1b0] sm:$0xff] %v589
        %603 = vst.msk [vmem:[#allocation2 + $0x1b8] sm:$0xff] %vm350, %v582
        %604 = vrot.lane.b32.xlu0 %v337, 106
        %v605 = vpop.permute.xlu0 %604
        %606 = vrot.lane.b32.xlu0 %v338, 106
        %v607 = vpop.permute.xlu0 %606
        %608 = vrot.lane.b32.xlu0 %v339, 106
        %v609 = vpop.permute.xlu0 %608
        %610 = vrot.lane.b32.xlu0 %v340, 106
        %v611 = vpop.permute.xlu0 %610
        %612 = vrot.lane.b32.xlu0 %v341, 106
        %v613 = vpop.permute.xlu0 %612
        %614 = vrot.lane.b32.xlu0 %v342, 106
        %v615 = vpop.permute.xlu0 %614
        %616 = vrot.lane.b32.xlu0 %v343, 106
        %v617 = vpop.permute.xlu0 %616
        %vm618 = vcmask 867328
        %v619 = vsel %vm618, %v605, %v607
        %v620 = vsel %vm618, %v607, %v609
        %v621 = vsel %vm618, %v609, %v611
        %v622 = vsel %vm618, %v611, %v613
        %v623 = vsel %vm618, %v613, %v615
        %v624 = vsel %vm618, %v615, %v617
        %632 = vst [vmem:[#allocation2 + $0x1c0] sm:$0xff] %v619
        %633 = vst [vmem:[#allocation2 + $0x1c8] sm:$0xff] %v620
        %634 = vst [vmem:[#allocation2 + $0x1d0] sm:$0xff] %v621
        %635 = vst [vmem:[#allocation2 + $0x1d8] sm:$0xff] %v622
        %636 = vst [vmem:[#allocation2 + $0x1e0] sm:$0xff] %v623
        %637 = vst [vmem:[#allocation2 + $0x1e8] sm:$0xff] %v624
        %638 = vst.msk [vmem:[#allocation2 + $0x1f0] sm:$0xff] %vm350, %v617
        %v639 = vunpack.c.h.bf16 %v336
        %641 = vrot.lane.b32.xlu0 %v337, 28
        %v642 = vpop.permute.xlu0 %641
        %643 = vrot.lane.b32.xlu0 %v338, 28
        %v644 = vpop.permute.xlu0 %643
        %645 = vrot.lane.b32.xlu0 %v339, 28
        %v646 = vpop.permute.xlu0 %645
        %647 = vrot.lane.b32.xlu0 %v340, 28
        %v648 = vpop.permute.xlu0 %647
        %649 = vrot.lane.b32.xlu0 %v341, 28
        %v650 = vpop.permute.xlu0 %649
        %651 = vrot.lane.b32.xlu0 %v342, 28
        %v652 = vpop.permute.xlu0 %651
        %653 = vrot.lane.b32.xlu0 %v343, 28
        %v654 = vpop.permute.xlu0 %653
        %655 = vrot.lane.b32.xlu0 %v639, 28
        %v656 = vpop.permute.xlu0 %655
        %vm657 = vcmask 228352
        %v658 = vsel %vm657, %v642, %v644
        %v659 = vsel %vm657, %v644, %v646
        %v660 = vsel %vm657, %v646, %v648
        %v661 = vsel %vm657, %v648, %v650
        %v662 = vsel %vm657, %v650, %v652
        %v663 = vsel %vm657, %v652, %v654
        %v664 = vsel %vm657, %v654, %v656
        %672 = vst [vmem:[#allocation2 + $0x1f8] sm:$0xff] %v658
        %673 = vst [vmem:[#allocation2 + $0x200] sm:$0xff] %v659
        %674 = vst [vmem:[#allocation2 + $0x208] sm:$0xff] %v660
        %675 = vst [vmem:[#allocation2 + $0x210] sm:$0xff] %v661
        %676 = vst [vmem:[#allocation2 + $0x218] sm:$0xff] %v662
        %677 = vst [vmem:[#allocation2 + $0x220] sm:$0xff] %v663
        %678 = vst.msk [vmem:[#allocation2 + $0x228] sm:$0xff] %vm350, %v664
        %679 = vrot.lane.b32.xlu0 %v337, 27
        %v680 = vpop.permute.xlu0 %679
        %681 = vrot.lane.b32.xlu0 %v338, 27
        %v682 = vpop.permute.xlu0 %681
        %683 = vrot.lane.b32.xlu0 %v339, 27
        %v684 = vpop.permute.xlu0 %683
        %685 = vrot.lane.b32.xlu0 %v340, 27
        %v686 = vpop.permute.xlu0 %685
        %687 = vrot.lane.b32.xlu0 %v341, 27
        %v688 = vpop.permute.xlu0 %687
        %689 = vrot.lane.b32.xlu0 %v342, 27
        %v690 = vpop.permute.xlu0 %689
        %691 = vrot.lane.b32.xlu0 %v343, 27
        %v692 = vpop.permute.xlu0 %691
        %693 = vrot.lane.b32.xlu0 %v639, 27
        %v694 = vpop.permute.xlu0 %693
        %vm695 = vcmask 220160
        %v696 = vsel %vm695, %v680, %v682
        %v697 = vsel %vm695, %v682, %v684
        %v698 = vsel %vm695, %v684, %v686
        %v699 = vsel %vm695, %v686, %v688
        %v700 = vsel %vm695, %v688, %v690
        %v701 = vsel %vm695, %v690, %v692
        %v702 = vsel %vm695, %v692, %v694
        %710 = vst [vmem:[#allocation2 + $0x230] sm:$0xff] %v696
        %711 = vst [vmem:[#allocation2 + $0x238] sm:$0xff] %v697
        %712 = vst [vmem:[#allocation2 + $0x240] sm:$0xff] %v698
        %713 = vst [vmem:[#allocation2 + $0x248] sm:$0xff] %v699
        %714 = vst [vmem:[#allocation2 + $0x250] sm:$0xff] %v700
        %715 = vst [vmem:[#allocation2 + $0x258] sm:$0xff] %v701
        %716 = vst.msk [vmem:[#allocation2 + $0x260] sm:$0xff] %vm350, %v702
        %717 = vrot.lane.b32.xlu0 %v337, 26
        %v718 = vpop.permute.xlu0 %717
        %719 = vrot.lane.b32.xlu0 %v338, 26
        %v720 = vpop.permute.xlu0 %719
        %721 = vrot.lane.b32.xlu0 %v339, 26
        %v722 = vpop.permute.xlu0 %721
        %723 = vrot.lane.b32.xlu0 %v340, 26
        %v724 = vpop.permute.xlu0 %723
        %725 = vrot.lane.b32.xlu0 %v341, 26
        %v726 = vpop.permute.xlu0 %725
        %727 = vrot.lane.b32.xlu0 %v342, 26
        %v728 = vpop.permute.xlu0 %727
        %729 = vrot.lane.b32.xlu0 %v343, 26
        %v730 = vpop.permute.xlu0 %729
        %731 = vrot.lane.b32.xlu0 %v639, 26
        %v732 = vpop.permute.xlu0 %731
        %vm733 = vcmask 211968
        %v734 = vsel %vm733, %v718, %v720
        %v735 = vsel %vm733, %v720, %v722
        %v736 = vsel %vm733, %v722, %v724
        %v737 = vsel %vm733, %v724, %v726
        %v738 = vsel %vm733, %v726, %v728
        %v739 = vsel %vm733, %v728, %v730
        %v740 = vsel %vm733, %v730, %v732
        %748 = vst [vmem:[#allocation2 + $0x268] sm:$0xff] %v734
        %749 = vst [vmem:[#allocation2 + $0x270] sm:$0xff] %v735
        %750 = vst [vmem:[#allocation2 + $0x278] sm:$0xff] %v736
        %751 = vst [vmem:[#allocation2 + $0x280] sm:$0xff] %v737
        %752 = vst [vmem:[#allocation2 + $0x288] sm:$0xff] %v738
        %753 = vst [vmem:[#allocation2 + $0x290] sm:$0xff] %v739
        %754 = vst.msk [vmem:[#allocation2 + $0x298] sm:$0xff] %vm350, %v740
        %755 = vrot.lane.b32.xlu0 %v337, 18
        %v756 = vpop.permute.xlu0 %755
        %757 = vrot.lane.b32.xlu0 %v338, 18
        %v758 = vpop.permute.xlu0 %757
        %759 = vrot.lane.b32.xlu0 %v339, 18
        %v760 = vpop.permute.xlu0 %759
        %761 = vrot.lane.b32.xlu0 %v340, 18
        %v762 = vpop.permute.xlu0 %761
        %763 = vrot.lane.b32.xlu0 %v341, 18
        %v764 = vpop.permute.xlu0 %763
        %765 = vrot.lane.b32.xlu0 %v342, 18
        %v766 = vpop.permute.xlu0 %765
        %767 = vrot.lane.b32.xlu0 %v343, 18
        %v768 = vpop.permute.xlu0 %767
        %769 = vrot.lane.b32.xlu0 %v639, 18
        %v770 = vpop.permute.xlu0 %769
        %vm771 = vcmask 146432
        %v772 = vsel %vm771, %v756, %v758
        %v773 = vsel %vm771, %v758, %v760
        %v774 = vsel %vm771, %v760, %v762
        %v775 = vsel %vm771, %v762, %v764
        %v776 = vsel %vm771, %v764, %v766
        %v777 = vsel %vm771, %v766, %v768
        %v778 = vsel %vm771, %v768, %v770
        %786 = vst [vmem:[#allocation2 + $0x2a0] sm:$0xff] %v772
        %787 = vst [vmem:[#allocation2 + $0x2a8] sm:$0xff] %v773
        %788 = vst [vmem:[#allocation2 + $0x2b0] sm:$0xff] %v774
        %789 = vst [vmem:[#allocation2 + $0x2b8] sm:$0xff] %v775
        %790 = vst [vmem:[#allocation2 + $0x2c0] sm:$0xff] %v776
        %791 = vst [vmem:[#allocation2 + $0x2c8] sm:$0xff] %v777
        %792 = vst.msk [vmem:[#allocation2 + $0x2d0] sm:$0xff] %vm350, %v778
        %793 = vrot.lane.b32.xlu0 %v337, 17
        %v794 = vpop.permute.xlu0 %793
        %795 = vrot.lane.b32.xlu0 %v338, 17
        %v796 = vpop.permute.xlu0 %795
        %797 = vrot.lane.b32.xlu0 %v339, 17
        %v798 = vpop.permute.xlu0 %797
        %799 = vrot.lane.b32.xlu0 %v340, 17
        %v800 = vpop.permute.xlu0 %799
        %801 = vrot.lane.b32.xlu0 %v341, 17
        %v802 = vpop.permute.xlu0 %801
        %803 = vrot.lane.b32.xlu0 %v342, 17
        %v804 = vpop.permute.xlu0 %803
        %805 = vrot.lane.b32.xlu0 %v343, 17
        %v806 = vpop.permute.xlu0 %805
        %807 = vrot.lane.b32.xlu0 %v639, 17
        %v808 = vpop.permute.xlu0 %807
        %vm809 = vcmask 138240
        %v810 = vsel %vm809, %v794, %v796
        %v811 = vsel %vm809, %v796, %v798
        %v812 = vsel %vm809, %v798, %v800
        %v813 = vsel %vm809, %v800, %v802
        %v814 = vsel %vm809, %v802, %v804
        %v815 = vsel %vm809, %v804, %v806
        %v816 = vsel %vm809, %v806, %v808
        %824 = vst [vmem:[#allocation2 + $0x2d8] sm:$0xff] %v810
        %825 = vst [vmem:[#allocation2 + $0x2e0] sm:$0xff] %v811
        %826 = vst [vmem:[#allocation2 + $0x2e8] sm:$0xff] %v812
        %827 = vst [vmem:[#allocation2 + $0x2f0] sm:$0xff] %v813
        %828 = vst [vmem:[#allocation2 + $0x2f8] sm:$0xff] %v814
        %829 = vst [vmem:[#allocation2 + $0x300] sm:$0xff] %v815
        %830 = vst.msk [vmem:[#allocation2 + $0x308] sm:$0xff] %vm350, %v816
        %831 = vrot.lane.b32.xlu0 %v337, 16
        %v832 = vpop.permute.xlu0 %831
        %833 = vrot.lane.b32.xlu0 %v338, 16
        %v834 = vpop.permute.xlu0 %833
        %835 = vrot.lane.b32.xlu0 %v339, 16
        %v836 = vpop.permute.xlu0 %835
        %837 = vrot.lane.b32.xlu0 %v340, 16
        %v838 = vpop.permute.xlu0 %837
        %839 = vrot.lane.b32.xlu0 %v341, 16
        %v840 = vpop.permute.xlu0 %839
        %841 = vrot.lane.b32.xlu0 %v342, 16
        %v842 = vpop.permute.xlu0 %841
        %843 = vrot.lane.b32.xlu0 %v343, 16
        %v844 = vpop.permute.xlu0 %843
        %845 = vrot.lane.b32.xlu0 %v639, 16
        %v846 = vpop.permute.xlu0 %845
        %vm847 = vcmask 130048
        %v848 = vsel %vm847, %v832, %v834
        %v849 = vsel %vm847, %v834, %v836
        %v850 = vsel %vm847, %v836, %v838
        %v851 = vsel %vm847, %v838, %v840
        %v852 = vsel %vm847, %v840, %v842
        %v853 = vsel %vm847, %v842, %v844
        %v854 = vsel %vm847, %v844, %v846
        %862 = vst [vmem:[#allocation2 + $0x310] sm:$0xff] %v848
        %863 = vst [vmem:[#allocation2 + $0x318] sm:$0xff] %v849
        %864 = vst [vmem:[#allocation2 + $0x320] sm:$0xff] %v850
        %865 = vst [vmem:[#allocation2 + $0x328] sm:$0xff] %v851
        %866 = vst [vmem:[#allocation2 + $0x330] sm:$0xff] %v852
        %867 = vst [vmem:[#allocation2 + $0x338] sm:$0xff] %v853
        %868 = vst.msk [vmem:[#allocation2 + $0x340] sm:$0xff] %vm350, %v854
        %869 = vrot.lane.b32.xlu0 %v337, 8
        %v870 = vpop.permute.xlu0 %869
        %871 = vrot.lane.b32.xlu0 %v338, 8
        %v872 = vpop.permute.xlu0 %871
        %873 = vrot.lane.b32.xlu0 %v339, 8
        %v874 = vpop.permute.xlu0 %873
        %875 = vrot.lane.b32.xlu0 %v340, 8
        %v876 = vpop.permute.xlu0 %875
        %877 = vrot.lane.b32.xlu0 %v341, 8
        %v878 = vpop.permute.xlu0 %877
        %879 = vrot.lane.b32.xlu0 %v342, 8
        %v880 = vpop.permute.xlu0 %879
        %881 = vrot.lane.b32.xlu0 %v343, 8
        %v882 = vpop.permute.xlu0 %881
        %883 = vrot.lane.b32.xlu0 %v639, 8
        %v884 = vpop.permute.xlu0 %883
        %vm885 = vcmask 64512
        %v886 = vsel %vm885, %v870, %v872
        %v887 = vsel %vm885, %v872, %v874
        %v888 = vsel %vm885, %v874, %v876
        %v889 = vsel %vm885, %v876, %v878
        %v890 = vsel %vm885, %v878, %v880
        %v891 = vsel %vm885, %v880, %v882
        %v892 = vsel %vm885, %v882, %v884
        %900 = vst [vmem:[#allocation2 + $0x348] sm:$0xff] %v886
        %901 = vst [vmem:[#allocation2 + $0x350] sm:$0xff] %v887
        %902 = vst [vmem:[#allocation2 + $0x358] sm:$0xff] %v888
        %903 = vst [vmem:[#allocation2 + $0x360] sm:$0xff] %v889
        %904 = vst [vmem:[#allocation2 + $0x368] sm:$0xff] %v890
        %905 = vst [vmem:[#allocation2 + $0x370] sm:$0xff] %v891
        %906 = vst.msk [vmem:[#allocation2 + $0x378] sm:$0xff] %vm350, %v892
        %907 = vrot.lane.b32.xlu0 %v337, 7
        %v908 = vpop.permute.xlu0 %907
        %909 = vrot.lane.b32.xlu0 %v338, 7
        %v910 = vpop.permute.xlu0 %909
        %911 = vrot.lane.b32.xlu0 %v339, 7
        %v912 = vpop.permute.xlu0 %911
        %913 = vrot.lane.b32.xlu0 %v340, 7
        %v914 = vpop.permute.xlu0 %913
        %915 = vrot.lane.b32.xlu0 %v341, 7
        %v916 = vpop.permute.xlu0 %915
        %917 = vrot.lane.b32.xlu0 %v342, 7
        %v918 = vpop.permute.xlu0 %917
        %919 = vrot.lane.b32.xlu0 %v343, 7
        %v920 = vpop.permute.xlu0 %919
        %921 = vrot.lane.b32.xlu0 %v639, 7
        %v922 = vpop.permute.xlu0 %921
        %vm923 = vcmask 56320
        %v924 = vsel %vm923, %v908, %v910
        %v925 = vsel %vm923, %v910, %v912
        %v926 = vsel %vm923, %v912, %v914
        %v927 = vsel %vm923, %v914, %v916
        %v928 = vsel %vm923, %v916, %v918
        %v929 = vsel %vm923, %v918, %v920
        %v930 = vsel %vm923, %v920, %v922
        %938 = vst [vmem:[#allocation2 + $0x380] sm:$0xff] %v924
        %939 = vst [vmem:[#allocation2 + $0x388] sm:$0xff] %v925
        %940 = vst [vmem:[#allocation2 + $0x390] sm:$0xff] %v926
        %941 = vst [vmem:[#allocation2 + $0x398] sm:$0xff] %v927
        %942 = vst [vmem:[#allocation2 + $0x3a0] sm:$0xff] %v928
        %943 = vst [vmem:[#allocation2 + $0x3a8] sm:$0xff] %v929
        %944 = vst.msk [vmem:[#allocation2 + $0x3b0] sm:$0xff] %vm350, %v930
        %945 = vrot.lane.b32.xlu0 %v337, 6
        %v946 = vpop.permute.xlu0 %945
        %947 = vrot.lane.b32.xlu0 %v338, 6
        %v948 = vpop.permute.xlu0 %947
        %949 = vrot.lane.b32.xlu0 %v339, 6
        %v950 = vpop.permute.xlu0 %949
        %951 = vrot.lane.b32.xlu0 %v340, 6
        %v952 = vpop.permute.xlu0 %951
        %953 = vrot.lane.b32.xlu0 %v341, 6
        %v954 = vpop.permute.xlu0 %953
        %955 = vrot.lane.b32.xlu0 %v342, 6
        %v956 = vpop.permute.xlu0 %955
        %957 = vrot.lane.b32.xlu0 %v343, 6
        %v958 = vpop.permute.xlu0 %957
        %959 = vrot.lane.b32.xlu0 %v639, 6
        %v960 = vpop.permute.xlu0 %959
        %vm961 = vcmask 48128
        %v962 = vsel %vm961, %v946, %v948
        %v963 = vsel %vm961, %v948, %v950
        %v964 = vsel %vm961, %v950, %v952
        %v965 = vsel %vm961, %v952, %v954
        %v966 = vsel %vm961, %v954, %v956
        %v967 = vsel %vm961, %v956, %v958
        %v968 = vsel %vm961, %v958, %v960
        %976 = vst [vmem:[#allocation2 + $0x3b8] sm:$0xff] %v962
        %977 = vst [vmem:[#allocation2 + $0x3c0] sm:$0xff] %v963
        %978 = vst [vmem:[#allocation2 + $0x3c8] sm:$0xff] %v964
        %979 = vst [vmem:[#allocation2 + $0x3d0] sm:$0xff] %v965
        %980 = vst [vmem:[#allocation2 + $0x3d8] sm:$0xff] %v966
        %981 = vst [vmem:[#allocation2 + $0x3e0] sm:$0xff] %v967
        %982 = vst.msk [vmem:[#allocation2 + $0x3e8] sm:$0xff] %vm350, %v968
        %987 = vrot.lane.b32.xlu0 %v333, 56
        %v988 = vpop.permute.xlu0 %987
        %989 = vrot.lane.b32.xlu0 %v334, 56
        %v990 = vpop.permute.xlu0 %989
        %991 = vrot.lane.b32.xlu0 %v335, 56
        %v992 = vpop.permute.xlu0 %991
        %993 = vrot.lane.b32.xlu0 %v336, 56
        %v994 = vpop.permute.xlu0 %993
        %v995 = vrot.slane %v988, 4
        %v996 = vrot.slane %v990, 4
        %v997 = vrot.slane %v992, 4
        %v998 = vrot.slane %v994, 4
        %vm999 = vcmask 1043456
        %v1000 = vsel %vm999, %v995, %v996
        %vm1001 = vcmask 457728
        %v1002 = vsel %vm1001, %v1000, %v990
        %v1003 = vsel %vm999, %v996, %v997
        %v1004 = vsel %vm1001, %v1003, %v992
        %v1005 = vsel %vm999, %v997, %v998
        %v1006 = vsel %vm1001, %v1005, %v994
        %v1011 = vunpack.c.l.bf16 %v1002
        %v1012 = vunpack.c.h.bf16 %v1002
        %v1013 = vunpack.c.l.bf16 %v1004
        %v1014 = vunpack.c.h.bf16 %v1004
        %v1015 = vunpack.c.l.bf16 %v1006
        %v1016 = vunpack.c.h.bf16 %v1006
        %v1017 = vunpack.c.l.bf16 %v998
        %1018 = vst [vmem:[#allocation2 + $0x3f0] sm:$0xff] %v1011
        %1019 = vst [vmem:[#allocation2 + $0x3f8] sm:$0xff] %v1012
        %1020 = vst [vmem:[#allocation2 + $0x400] sm:$0xff] %v1013
        %1021 = vst [vmem:[#allocation2 + $0x408] sm:$0xff] %v1014
        %1022 = vst [vmem:[#allocation2 + $0x410] sm:$0xff] %v1015
        %1023 = vst [vmem:[#allocation2 + $0x418] sm:$0xff] %v1016
        %1024 = vst.msk [vmem:[#allocation2 + $0x420] sm:$0xff] %vm350, %v1017
        %1025 = vrot.lane.b32.xlu0 %v333, 55
        %v1026 = vpop.permute.xlu0 %1025
        %1027 = vrot.lane.b32.xlu0 %v334, 55
        %v1028 = vpop.permute.xlu0 %1027
        %1029 = vrot.lane.b32.xlu0 %v335, 55
        %v1030 = vpop.permute.xlu0 %1029
        %1031 = vrot.lane.b32.xlu0 %v336, 55
        %v1032 = vpop.permute.xlu0 %1031
        %v1033 = vrot.slane %v1026, 4
        %v1034 = vrot.slane %v1028, 4
        %v1035 = vrot.slane %v1030, 4
        %v1036 = vrot.slane %v1032, 4
        %v1037 = vsel %vm999, %v1033, %v1034
        %vm1038 = vcmask 449536
        %v1039 = vsel %vm1038, %v1037, %v1028
        %v1040 = vsel %vm999, %v1034, %v1035
        %v1041 = vsel %vm1038, %v1040, %v1030
        %v1042 = vsel %vm999, %v1035, %v1036
        %v1043 = vsel %vm1038, %v1042, %v1032
        %v1048 = vunpack.c.l.bf16 %v1039
        %v1049 = vunpack.c.h.bf16 %v1039
        %v1050 = vunpack.c.l.bf16 %v1041
        %v1051 = vunpack.c.h.bf16 %v1041
        %v1052 = vunpack.c.l.bf16 %v1043
        %v1053 = vunpack.c.h.bf16 %v1043
        %v1054 = vunpack.c.l.bf16 %v1036
        %1055 = vst [vmem:[#allocation2 + $0x428] sm:$0xff] %v1048
        %1056 = vst [vmem:[#allocation2 + $0x430] sm:$0xff] %v1049
        %1057 = vst [vmem:[#allocation2 + $0x438] sm:$0xff] %v1050
        %1058 = vst [vmem:[#allocation2 + $0x440] sm:$0xff] %v1051
        %1059 = vst [vmem:[#allocation2 + $0x448] sm:$0xff] %v1052
        %1060 = vst [vmem:[#allocation2 + $0x450] sm:$0xff] %v1053
        %1061 = vst.msk [vmem:[#allocation2 + $0x458] sm:$0xff] %vm350, %v1054
        %1062 = vrot.lane.b32.xlu0 %v333, 54
        %v1063 = vpop.permute.xlu0 %1062
        %1064 = vrot.lane.b32.xlu0 %v334, 54
        %v1065 = vpop.permute.xlu0 %1064
        %1066 = vrot.lane.b32.xlu0 %v335, 54
        %v1067 = vpop.permute.xlu0 %1066
        %1068 = vrot.lane.b32.xlu0 %v336, 54
        %v1069 = vpop.permute.xlu0 %1068
        %v1070 = vrot.slane %v1063, 4
        %v1071 = vrot.slane %v1065, 4
        %v1072 = vrot.slane %v1067, 4
        %v1073 = vrot.slane %v1069, 4
        %v1074 = vsel %vm999, %v1070, %v1071
        %vm1075 = vcmask 441344
        %v1076 = vsel %vm1075, %v1074, %v1065
        %v1077 = vsel %vm999, %v1071, %v1072
        %v1078 = vsel %vm1075, %v1077, %v1067
        %v1079 = vsel %vm999, %v1072, %v1073
        %v1080 = vsel %vm1075, %v1079, %v1069
        %v1085 = vunpack.c.l.bf16 %v1076
        %v1086 = vunpack.c.h.bf16 %v1076
        %v1087 = vunpack.c.l.bf16 %v1078
        %v1088 = vunpack.c.h.bf16 %v1078
        %v1089 = vunpack.c.l.bf16 %v1080
        %v1090 = vunpack.c.h.bf16 %v1080
        %v1091 = vunpack.c.l.bf16 %v1073
        %1092 = vst [vmem:[#allocation2 + $0x460] sm:$0xff] %v1085
        %1093 = vst [vmem:[#allocation2 + $0x468] sm:$0xff] %v1086
        %1094 = vst [vmem:[#allocation2 + $0x470] sm:$0xff] %v1087
        %1095 = vst [vmem:[#allocation2 + $0x478] sm:$0xff] %v1088
        %1096 = vst [vmem:[#allocation2 + $0x480] sm:$0xff] %v1089
        %1097 = vst [vmem:[#allocation2 + $0x488] sm:$0xff] %v1090
        %1098 = vst.msk [vmem:[#allocation2 + $0x490] sm:$0xff] %vm350, %v1091
        %1099 = vrot.lane.b32.xlu0 %v333, 46
        %v1100 = vpop.permute.xlu0 %1099
        %1101 = vrot.lane.b32.xlu0 %v334, 46
        %v1102 = vpop.permute.xlu0 %1101
        %1103 = vrot.lane.b32.xlu0 %v335, 46
        %v1104 = vpop.permute.xlu0 %1103
        %1105 = vrot.lane.b32.xlu0 %v336, 46
        %v1106 = vpop.permute.xlu0 %1105
        %v1107 = vrot.slane %v1100, 4
        %v1108 = vrot.slane %v1102, 4
        %v1109 = vrot.slane %v1104, 4
        %v1110 = vrot.slane %v1106, 4
        %v1111 = vsel %vm999, %v1107, %v1108
        %vm1112 = vcmask 375808
        %v1113 = vsel %vm1112, %v1111, %v1102
        %v1114 = vsel %vm999, %v1108, %v1109
        %v1115 = vsel %vm1112, %v1114, %v1104
        %v1116 = vsel %vm999, %v1109, %v1110
        %v1117 = vsel %vm1112, %v1116, %v1106
        %v1122 = vunpack.c.l.bf16 %v1113
        %v1123 = vunpack.c.h.bf16 %v1113
        %v1124 = vunpack.c.l.bf16 %v1115
        %v1125 = vunpack.c.h.bf16 %v1115
        %v1126 = vunpack.c.l.bf16 %v1117
        %v1127 = vunpack.c.h.bf16 %v1117
        %v1128 = vunpack.c.l.bf16 %v1110
        %1129 = vst [vmem:[#allocation2 + $0x498] sm:$0xff] %v1122
        %1130 = vst [vmem:[#allocation2 + $0x4a0] sm:$0xff] %v1123
        %1131 = vst [vmem:[#allocation2 + $0x4a8] sm:$0xff] %v1124
        %1132 = vst [vmem:[#allocation2 + $0x4b0] sm:$0xff] %v1125
        %1133 = vst [vmem:[#allocation2 + $0x4b8] sm:$0xff] %v1126
        %1134 = vst [vmem:[#allocation2 + $0x4c0] sm:$0xff] %v1127
        %1135 = vst.msk [vmem:[#allocation2 + $0x4c8] sm:$0xff] %vm350, %v1128
        %1136 = vrot.lane.b32.xlu0 %v333, 45
        %v1137 = vpop.permute.xlu0 %1136
        %1138 = vrot.lane.b32.xlu0 %v334, 45
        %v1139 = vpop.permute.xlu0 %1138
        %1140 = vrot.lane.b32.xlu0 %v335, 45
        %v1141 = vpop.permute.xlu0 %1140
        %1142 = vrot.lane.b32.xlu0 %v336, 45
        %v1143 = vpop.permute.xlu0 %1142
        %v1144 = vrot.slane %v1137, 4
        %v1145 = vrot.slane %v1139, 4
        %v1146 = vrot.slane %v1141, 4
        %v1147 = vrot.slane %v1143, 4
        %v1148 = vsel %vm999, %v1144, %v1145
        %vm1149 = vcmask 367616
        %v1150 = vsel %vm1149, %v1148, %v1139
        %v1151 = vsel %vm999, %v1145, %v1146
        %v1152 = vsel %vm1149, %v1151, %v1141
        %v1153 = vsel %vm999, %v1146, %v1147
        %v1154 = vsel %vm1149, %v1153, %v1143
        %v1159 = vunpack.c.l.bf16 %v1150
        %v1160 = vunpack.c.h.bf16 %v1150
        %v1161 = vunpack.c.l.bf16 %v1152
        %v1162 = vunpack.c.h.bf16 %v1152
        %v1163 = vunpack.c.l.bf16 %v1154
        %v1164 = vunpack.c.h.bf16 %v1154
        %v1165 = vunpack.c.l.bf16 %v1147
        %1166 = vst [vmem:[#allocation2 + $0x4d0] sm:$0xff] %v1159
        %1167 = vst [vmem:[#allocation2 + $0x4d8] sm:$0xff] %v1160
        %1168 = vst [vmem:[#allocation2 + $0x4e0] sm:$0xff] %v1161
        %1169 = vst [vmem:[#allocation2 + $0x4e8] sm:$0xff] %v1162
        %1170 = vst [vmem:[#allocation2 + $0x4f0] sm:$0xff] %v1163
        %1171 = vst [vmem:[#allocation2 + $0x4f8] sm:$0xff] %v1164
        %1172 = vst.msk [vmem:[#allocation2 + $0x500] sm:$0xff] %vm350, %v1165
        %1173 = vrot.lane.b32.xlu0 %v333, 44
        %v1174 = vpop.permute.xlu0 %1173
        %1175 = vrot.lane.b32.xlu0 %v334, 44
        %v1176 = vpop.permute.xlu0 %1175
        %1177 = vrot.lane.b32.xlu0 %v335, 44
        %v1178 = vpop.permute.xlu0 %1177
        %1179 = vrot.lane.b32.xlu0 %v336, 44
        %v1180 = vpop.permute.xlu0 %1179
        %v1181 = vrot.slane %v1174, 4
        %v1182 = vrot.slane %v1176, 4
        %v1183 = vrot.slane %v1178, 4
        %v1184 = vrot.slane %v1180, 4
        %v1185 = vsel %vm999, %v1181, %v1182
        %vm1186 = vcmask 359424
        %v1187 = vsel %vm1186, %v1185, %v1176
        %v1188 = vsel %vm999, %v1182, %v1183
        %v1189 = vsel %vm1186, %v1188, %v1178
        %v1190 = vsel %vm999, %v1183, %v1184
        %v1191 = vsel %vm1186, %v1190, %v1180
        %v1196 = vunpack.c.l.bf16 %v1187
        %v1197 = vunpack.c.h.bf16 %v1187
        %v1198 = vunpack.c.l.bf16 %v1189
        %v1199 = vunpack.c.h.bf16 %v1189
        %v1200 = vunpack.c.l.bf16 %v1191
        %v1201 = vunpack.c.h.bf16 %v1191
        %v1202 = vunpack.c.l.bf16 %v1184
        %1203 = vst [vmem:[#allocation2 + $0x508] sm:$0xff] %v1196
        %1204 = vst [vmem:[#allocation2 + $0x510] sm:$0xff] %v1197
        %1205 = vst [vmem:[#allocation2 + $0x518] sm:$0xff] %v1198
        %1206 = vst [vmem:[#allocation2 + $0x520] sm:$0xff] %v1199
        %1207 = vst [vmem:[#allocation2 + $0x528] sm:$0xff] %v1200
        %1208 = vst [vmem:[#allocation2 + $0x530] sm:$0xff] %v1201
        %1209 = vst.msk [vmem:[#allocation2 + $0x538] sm:$0xff] %vm350, %v1202
        %1210 = vrot.lane.b32.xlu0 %v333, 36
        %v1211 = vpop.permute.xlu0 %1210
        %1212 = vrot.lane.b32.xlu0 %v334, 36
        %v1213 = vpop.permute.xlu0 %1212
        %1214 = vrot.lane.b32.xlu0 %v335, 36
        %v1215 = vpop.permute.xlu0 %1214
        %1216 = vrot.lane.b32.xlu0 %v336, 36
        %v1217 = vpop.permute.xlu0 %1216
        %v1218 = vrot.slane %v1211, 4
        %v1219 = vrot.slane %v1213, 4
        %v1220 = vrot.slane %v1215, 4
        %v1221 = vrot.slane %v1217, 4
        %v1222 = vsel %vm999, %v1218, %v1219
        %vm1223 = vcmask 293888
        %v1224 = vsel %vm1223, %v1222, %v1213
        %v1225 = vsel %vm999, %v1219, %v1220
        %v1226 = vsel %vm1223, %v1225, %v1215
        %v1227 = vsel %vm999, %v1220, %v1221
        %v1228 = vsel %vm1223, %v1227, %v1217
        %v1233 = vunpack.c.l.bf16 %v1224
        %v1234 = vunpack.c.h.bf16 %v1224
        %v1235 = vunpack.c.l.bf16 %v1226
        %v1236 = vunpack.c.h.bf16 %v1226
        %v1237 = vunpack.c.l.bf16 %v1228
        %v1238 = vunpack.c.h.bf16 %v1228
        %v1239 = vunpack.c.l.bf16 %v1221
        %1240 = vst [vmem:[#allocation2 + $0x540] sm:$0xff] %v1233
        %1241 = vst [vmem:[#allocation2 + $0x548] sm:$0xff] %v1234
        %1242 = vst [vmem:[#allocation2 + $0x550] sm:$0xff] %v1235
        %1243 = vst [vmem:[#allocation2 + $0x558] sm:$0xff] %v1236
        %1244 = vst [vmem:[#allocation2 + $0x560] sm:$0xff] %v1237
        %1245 = vst [vmem:[#allocation2 + $0x568] sm:$0xff] %v1238
        %1246 = vst.msk [vmem:[#allocation2 + $0x570] sm:$0xff] %vm350, %v1239
        %1247 = vrot.lane.b32.xlu0 %v333, 35
        %v1248 = vpop.permute.xlu0 %1247
        %1249 = vrot.lane.b32.xlu0 %v334, 35
        %v1250 = vpop.permute.xlu0 %1249
        %1251 = vrot.lane.b32.xlu0 %v335, 35
        %v1252 = vpop.permute.xlu0 %1251
        %1253 = vrot.lane.b32.xlu0 %v336, 35
        %v1254 = vpop.permute.xlu0 %1253
        %v1255 = vrot.slane %v1248, 4
        %v1256 = vrot.slane %v1250, 4
        %v1257 = vrot.slane %v1252, 4
        %v1258 = vrot.slane %v1254, 4
        %v1259 = vsel %vm999, %v1255, %v1256
        %vm1260 = vcmask 285696
        %v1261 = vsel %vm1260, %v1259, %v1250
        %v1262 = vsel %vm999, %v1256, %v1257
        %v1263 = vsel %vm1260, %v1262, %v1252
        %v1264 = vsel %vm999, %v1257, %v1258
        %v1265 = vsel %vm1260, %v1264, %v1254
        %v1270 = vunpack.c.l.bf16 %v1261
        %v1271 = vunpack.c.h.bf16 %v1261
        %v1272 = vunpack.c.l.bf16 %v1263
        %v1273 = vunpack.c.h.bf16 %v1263
        %v1274 = vunpack.c.l.bf16 %v1265
        %v1275 = vunpack.c.h.bf16 %v1265
        %v1276 = vunpack.c.l.bf16 %v1258
        %1277 = vst [vmem:[#allocation2 + $0x578] sm:$0xff] %v1270
        %1278 = vst [vmem:[#allocation2 + $0x580] sm:$0xff] %v1271
        %1279 = vst [vmem:[#allocation2 + $0x588] sm:$0xff] %v1272
        %1280 = vst [vmem:[#allocation2 + $0x590] sm:$0xff] %v1273
        %1281 = vst [vmem:[#allocation2 + $0x598] sm:$0xff] %v1274
        %1282 = vst [vmem:[#allocation2 + $0x5a0] sm:$0xff] %v1275
        %1283 = vst.msk [vmem:[#allocation2 + $0x5a8] sm:$0xff] %vm350, %v1276
        %1284 = vrot.lane.b32.xlu0 %v333, 34
        %v1285 = vpop.permute.xlu0 %1284
        %1286 = vrot.lane.b32.xlu0 %v334, 34
        %v1287 = vpop.permute.xlu0 %1286
        %1288 = vrot.lane.b32.xlu0 %v335, 34
        %v1289 = vpop.permute.xlu0 %1288
        %1290 = vrot.lane.b32.xlu0 %v336, 34
        %v1291 = vpop.permute.xlu0 %1290
        %v1292 = vrot.slane %v1285, 4
        %v1293 = vrot.slane %v1287, 4
        %v1294 = vrot.slane %v1289, 4
        %v1295 = vrot.slane %v1291, 4
        %v1296 = vsel %vm999, %v1292, %v1293
        %vm1297 = vcmask 277504
        %v1298 = vsel %vm1297, %v1296, %v1287
        %v1299 = vsel %vm999, %v1293, %v1294
        %v1300 = vsel %vm1297, %v1299, %v1289
        %v1301 = vsel %vm999, %v1294, %v1295
        %v1302 = vsel %vm1297, %v1301, %v1291
        %v1307 = vunpack.c.l.bf16 %v1298
        %v1308 = vunpack.c.h.bf16 %v1298
        %v1309 = vunpack.c.l.bf16 %v1300
        %v1310 = vunpack.c.h.bf16 %v1300
        %v1311 = vunpack.c.l.bf16 %v1302
        %v1312 = vunpack.c.h.bf16 %v1302
        %v1313 = vunpack.c.l.bf16 %v1295
        %1314 = vst [vmem:[#allocation2 + $0x5b0] sm:$0xff] %v1307
        %1315 = vst [vmem:[#allocation2 + $0x5b8] sm:$0xff] %v1308
        %1316 = vst [vmem:[#allocation2 + $0x5c0] sm:$0xff] %v1309
        %1317 = vst [vmem:[#allocation2 + $0x5c8] sm:$0xff] %v1310
        %1318 = vst [vmem:[#allocation2 + $0x5d0] sm:$0xff] %v1311
        %1319 = vst [vmem:[#allocation2 + $0x5d8] sm:$0xff] %v1312
        %1320 = vst.msk [vmem:[#allocation2 + $0x5e0] sm:$0xff] %vm350, %v1313
        %v1321 = vld [vmem:[%s1] sm:$0xff]
        %v1322 = vld [vmem:[%s1 + $0x8] sm:$0xff]
        %v1323 = vld [vmem:[#allocation2] sm:$0xff]
        %v1324 = vld [vmem:[#allocation2 + $0x8] sm:$0xff]
        %v1325 = vld [vmem:[#allocation2 + $0x10] sm:$0xff]
        %v1326 = vld [vmem:[#allocation2 + $0x18] sm:$0xff]
        %v1327 = vld [vmem:[#allocation2 + $0x20] sm:$0xff]
        %v1328 = vld [vmem:[#allocation2 + $0x28] sm:$0xff]
        %v1329 = vld [vmem:[#allocation2 + $0x30] sm:$0xff]
        %v1330 = vld [vmem:[#allocation2 + $0x38] sm:$0xff]
        %v1331 = vld [vmem:[#allocation2 + $0x40] sm:$0xff]
        %v1332 = vld [vmem:[#allocation2 + $0x48] sm:$0xff]
        %v1333 = vld [vmem:[#allocation2 + $0x50] sm:$0xff]
        %v1334 = vld [vmem:[#allocation2 + $0x58] sm:$0xff]
        %v1335 = vld [vmem:[#allocation2 + $0x60] sm:$0xff]
        %v1336 = vld [vmem:[#allocation2 + $0x68] sm:$0xff]
        %v1337 = vld [vmem:[#allocation2 + $0x70] sm:$0xff]
        %v1338 = vld [vmem:[#allocation2 + $0x78] sm:$0xff]
        %v1339 = vld [vmem:[#allocation2 + $0x80] sm:$0xff]
        %v1340 = vld [vmem:[#allocation2 + $0x88] sm:$0xff]
        %v1341 = vld [vmem:[#allocation2 + $0x90] sm:$0xff]
        %v1342 = vld [vmem:[#allocation2 + $0x98] sm:$0xff]
        %v1343 = vld [vmem:[#allocation2 + $0xa0] sm:$0xff]
        %v1344 = vld [vmem:[#allocation2 + $0xa8] sm:$0xff]
        %v1345 = vld [vmem:[#allocation2 + $0xb0] sm:$0xff]
        %v1346 = vld [vmem:[#allocation2 + $0xb8] sm:$0xff]
        %v1347 = vld [vmem:[#allocation2 + $0xc0] sm:$0xff]
        %v1348 = vld [vmem:[#allocation2 + $0xc8] sm:$0xff]
        %v1349 = vld [vmem:[#allocation2 + $0xd0] sm:$0xff]
        %v1350 = vld [vmem:[#allocation2 + $0xd8] sm:$0xff]
        %v1351 = vld [vmem:[#allocation2 + $0xe0] sm:$0xff]
        %v1352 = vld [vmem:[#allocation2 + $0xe8] sm:$0xff]
        %v1353 = vld [vmem:[#allocation2 + $0xf0] sm:$0xff]
        %v1354 = vld [vmem:[#allocation2 + $0xf8] sm:$0xff]
        %v1355 = vld [vmem:[#allocation2 + $0x100] sm:$0xff]
        %v1356 = vld [vmem:[#allocation2 + $0x108] sm:$0xff]
        %v1357 = vld [vmem:[#allocation2 + $0x110] sm:$0xff]
        %v1358 = vld [vmem:[#allocation2 + $0x118] sm:$0xff]
        %v1359 = vld [vmem:[#allocation2 + $0x120] sm:$0xff]
        %v1360 = vld [vmem:[#allocation2 + $0x128] sm:$0xff]
        %v1361 = vld [vmem:[#allocation2 + $0x130] sm:$0xff]
        %v1362 = vld [vmem:[#allocation2 + $0x138] sm:$0xff]
        %v1363 = vld [vmem:[#allocation2 + $0x140] sm:$0xff]
        %v1364 = vld [vmem:[#allocation2 + $0x148] sm:$0xff]
        %v1365 = vld [vmem:[#allocation2 + $0x150] sm:$0xff]
        %v1366 = vld [vmem:[#allocation2 + $0x158] sm:$0xff]
        %v1367 = vld [vmem:[#allocation2 + $0x160] sm:$0xff]
        %v1368 = vld [vmem:[#allocation2 + $0x168] sm:$0xff]
        %v1369 = vld [vmem:[#allocation2 + $0x170] sm:$0xff]
        %v1370 = vld [vmem:[#allocation2 + $0x178] sm:$0xff]
        %v1371 = vld [vmem:[#allocation2 + $0x180] sm:$0xff]
        %v1372 = vld [vmem:[#allocation2 + $0x188] sm:$0xff]
        %v1373 = vld [vmem:[#allocation2 + $0x190] sm:$0xff]
        %v1374 = vld [vmem:[#allocation2 + $0x198] sm:$0xff]
        %v1375 = vld [vmem:[#allocation2 + $0x1a0] sm:$0xff]
        %v1376 = vld [vmem:[#allocation2 + $0x1a8] sm:$0xff]
        %v1377 = vld [vmem:[#allocation2 + $0x1b0] sm:$0xff]
        %v1378 = vld [vmem:[#allocation2 + $0x1b8] sm:$0xff]
        %v1379 = vld [vmem:[#allocation2 + $0x1c0] sm:$0xff]
        %v1380 = vld [vmem:[#allocation2 + $0x1c8] sm:$0xff]
        %v1381 = vld [vmem:[#allocation2 + $0x1d0] sm:$0xff]
        %v1382 = vld [vmem:[#allocation2 + $0x1d8] sm:$0xff]
        %v1383 = vld [vmem:[#allocation2 + $0x1e0] sm:$0xff]
        %v1384 = vld [vmem:[#allocation2 + $0x1e8] sm:$0xff]
        %v1385 = vld [vmem:[#allocation2 + $0x1f0] sm:$0xff]
        %v1386 = vld [vmem:[#allocation2 + $0x1f8] sm:$0xff]
        %v1387 = vld [vmem:[#allocation2 + $0x200] sm:$0xff]
        %v1388 = vld [vmem:[#allocation2 + $0x208] sm:$0xff]
        %v1389 = vld [vmem:[#allocation2 + $0x210] sm:$0xff]
        %v1390 = vld [vmem:[#allocation2 + $0x218] sm:$0xff]
        %v1391 = vld [vmem:[#allocation2 + $0x220] sm:$0xff]
        %v1392 = vld [vmem:[#allocation2 + $0x228] sm:$0xff]
        %v1393 = vld [vmem:[#allocation2 + $0x230] sm:$0xff]
        %v1394 = vld [vmem:[#allocation2 + $0x238] sm:$0xff]
        %v1395 = vld [vmem:[#allocation2 + $0x240] sm:$0xff]
        %v1396 = vld [vmem:[#allocation2 + $0x248] sm:$0xff]
        %v1397 = vld [vmem:[#allocation2 + $0x250] sm:$0xff]
        %v1398 = vld [vmem:[#allocation2 + $0x258] sm:$0xff]
        %v1399 = vld [vmem:[#allocation2 + $0x260] sm:$0xff]
        %v1400 = vld [vmem:[#allocation2 + $0x268] sm:$0xff]
        %v1401 = vld [vmem:[#allocation2 + $0x270] sm:$0xff]
        %v1402 = vld [vmem:[#allocation2 + $0x278] sm:$0xff]
        %v1403 = vld [vmem:[#allocation2 + $0x280] sm:$0xff]
        %v1404 = vld [vmem:[#allocation2 + $0x288] sm:$0xff]
        %v1405 = vld [vmem:[#allocation2 + $0x290] sm:$0xff]
        %v1406 = vld [vmem:[#allocation2 + $0x298] sm:$0xff]
        %v1407 = vld [vmem:[#allocation2 + $0x2a0] sm:$0xff]
        %v1408 = vld [vmem:[#allocation2 + $0x2a8] sm:$0xff]
        %v1409 = vld [vmem:[#allocation2 + $0x2b0] sm:$0xff]
        %v1410 = vld [vmem:[#allocation2 + $0x2b8] sm:$0xff]
        %v1411 = vld [vmem:[#allocation2 + $0x2c0] sm:$0xff]
        %v1412 = vld [vmem:[#allocation2 + $0x2c8] sm:$0xff]
        %v1413 = vld [vmem:[#allocation2 + $0x2d0] sm:$0xff]
        %v1414 = vld [vmem:[#allocation2 + $0x2d8] sm:$0xff]
        %v1415 = vld [vmem:[#allocation2 + $0x2e0] sm:$0xff]
        %v1416 = vld [vmem:[#allocation2 + $0x2e8] sm:$0xff]
        %v1417 = vld [vmem:[#allocation2 + $0x2f0] sm:$0xff]
        %v1418 = vld [vmem:[#allocation2 + $0x2f8] sm:$0xff]
        %v1419 = vld [vmem:[#allocation2 + $0x300] sm:$0xff]
        %v1420 = vld [vmem:[#allocation2 + $0x308] sm:$0xff]
        %v1421 = vld [vmem:[#allocation2 + $0x310] sm:$0xff]
        %v1422 = vld [vmem:[#allocation2 + $0x318] sm:$0xff]
        %v1423 = vld [vmem:[#allocation2 + $0x320] sm:$0xff]
        %v1424 = vld [vmem:[#allocation2 + $0x328] sm:$0xff]
        %v1425 = vld [vmem:[#allocation2 + $0x330] sm:$0xff]
        %v1426 = vld [vmem:[#allocation2 + $0x338] sm:$0xff]
        %v1427 = vld [vmem:[#allocation2 + $0x340] sm:$0xff]
        %v1428 = vld [vmem:[#allocation2 + $0x348] sm:$0xff]
        %v1429 = vld [vmem:[#allocation2 + $0x350] sm:$0xff]
        %v1430 = vld [vmem:[#allocation2 + $0x358] sm:$0xff]
        %v1431 = vld [vmem:[#allocation2 + $0x360] sm:$0xff]
        %v1432 = vld [vmem:[#allocation2 + $0x368] sm:$0xff]
        %v1433 = vld [vmem:[#allocation2 + $0x370] sm:$0xff]
        %v1434 = vld [vmem:[#allocation2 + $0x378] sm:$0xff]
        %v1435 = vld [vmem:[#allocation2 + $0x380] sm:$0xff]
        %v1436 = vld [vmem:[#allocation2 + $0x388] sm:$0xff]
        %v1437 = vld [vmem:[#allocation2 + $0x390] sm:$0xff]
        %v1438 = vld [vmem:[#allocation2 + $0x398] sm:$0xff]
        %v1439 = vld [vmem:[#allocation2 + $0x3a0] sm:$0xff]
        %v1440 = vld [vmem:[#allocation2 + $0x3a8] sm:$0xff]
        %v1441 = vld [vmem:[#allocation2 + $0x3b0] sm:$0xff]
        %v1442 = vld [vmem:[#allocation2 + $0x3b8] sm:$0xff]
        %v1443 = vld [vmem:[#allocation2 + $0x3c0] sm:$0xff]
        %v1444 = vld [vmem:[#allocation2 + $0x3c8] sm:$0xff]
        %v1445 = vld [vmem:[#allocation2 + $0x3d0] sm:$0xff]
        %v1446 = vld [vmem:[#allocation2 + $0x3d8] sm:$0xff]
        %v1447 = vld [vmem:[#allocation2 + $0x3e0] sm:$0xff]
        %v1448 = vld [vmem:[#allocation2 + $0x3e8] sm:$0xff]
        %v1449 = vld [vmem:[#allocation2 + $0x3f0] sm:$0xff]
        %v1450 = vld [vmem:[#allocation2 + $0x3f8] sm:$0xff]
        %v1451 = vld [vmem:[#allocation2 + $0x400] sm:$0xff]
        %v1452 = vld [vmem:[#allocation2 + $0x408] sm:$0xff]
        %v1453 = vld [vmem:[#allocation2 + $0x410] sm:$0xff]
        %v1454 = vld [vmem:[#allocation2 + $0x418] sm:$0xff]
        %v1455 = vld [vmem:[#allocation2 + $0x420] sm:$0xff]
        %v1456 = vld [vmem:[#allocation2 + $0x428] sm:$0xff]
        %v1457 = vld [vmem:[#allocation2 + $0x430] sm:$0xff]
        %v1458 = vld [vmem:[#allocation2 + $0x438] sm:$0xff]
        %v1459 = vld [vmem:[#allocation2 + $0x440] sm:$0xff]
        %v1460 = vld [vmem:[#allocation2 + $0x448] sm:$0xff]
        %v1461 = vld [vmem:[#allocation2 + $0x450] sm:$0xff]
        %v1462 = vld [vmem:[#allocation2 + $0x458] sm:$0xff]
        %v1463 = vld [vmem:[#allocation2 + $0x460] sm:$0xff]
        %v1464 = vld [vmem:[#allocation2 + $0x468] sm:$0xff]
        %v1465 = vld [vmem:[#allocation2 + $0x470] sm:$0xff]
        %v1466 = vld [vmem:[#allocation2 + $0x478] sm:$0xff]
        %v1467 = vld [vmem:[#allocation2 + $0x480] sm:$0xff]
        %v1468 = vld [vmem:[#allocation2 + $0x488] sm:$0xff]
        %v1469 = vld [vmem:[#allocation2 + $0x490] sm:$0xff]
        %v1470 = vld [vmem:[#allocation2 + $0x498] sm:$0xff]
        %v1471 = vld [vmem:[#allocation2 + $0x4a0] sm:$0xff]
        %v1472 = vld [vmem:[#allocation2 + $0x4a8] sm:$0xff]
        %v1473 = vld [vmem:[#allocation2 + $0x4b0] sm:$0xff]
        %v1474 = vld [vmem:[#allocation2 + $0x4b8] sm:$0xff]
        %v1475 = vld [vmem:[#allocation2 + $0x4c0] sm:$0xff]
        %v1476 = vld [vmem:[#allocation2 + $0x4c8] sm:$0xff]
        %v1477 = vld [vmem:[#allocation2 + $0x4d0] sm:$0xff]
        %v1478 = vld [vmem:[#allocation2 + $0x4d8] sm:$0xff]
        %v1479 = vld [vmem:[#allocation2 + $0x4e0] sm:$0xff]
        %v1480 = vld [vmem:[#allocation2 + $0x4e8] sm:$0xff]
        %v1481 = vld [vmem:[#allocation2 + $0x4f0] sm:$0xff]
        %v1482 = vld [vmem:[#allocation2 + $0x4f8] sm:$0xff]
        %v1483 = vld [vmem:[#allocation2 + $0x500] sm:$0xff]
        %v1484 = vld [vmem:[#allocation2 + $0x508] sm:$0xff]
        %v1485 = vld [vmem:[#allocation2 + $0x510] sm:$0xff]
        %v1486 = vld [vmem:[#allocation2 + $0x518] sm:$0xff]
        %v1487 = vld [vmem:[#allocation2 + $0x520] sm:$0xff]
        %v1488 = vld [vmem:[#allocation2 + $0x528] sm:$0xff]
        %v1489 = vld [vmem:[#allocation2 + $0x530] sm:$0xff]
        %v1490 = vld [vmem:[#allocation2 + $0x538] sm:$0xff]
        %v1491 = vld [vmem:[#allocation2 + $0x540] sm:$0xff]
        %v1492 = vld [vmem:[#allocation2 + $0x548] sm:$0xff]
        %v1493 = vld [vmem:[#allocation2 + $0x550] sm:$0xff]
        %v1494 = vld [vmem:[#allocation2 + $0x558] sm:$0xff]
        %v1495 = vld [vmem:[#allocation2 + $0x560] sm:$0xff]
        %v1496 = vld [vmem:[#allocation2 + $0x568] sm:$0xff]
        %v1497 = vld [vmem:[#allocation2 + $0x570] sm:$0xff]
        %v1498 = vld [vmem:[#allocation2 + $0x578] sm:$0xff]
        %v1499 = vld [vmem:[#allocation2 + $0x580] sm:$0xff]
        %v1500 = vld [vmem:[#allocation2 + $0x588] sm:$0xff]
        %v1501 = vld [vmem:[#allocation2 + $0x590] sm:$0xff]
        %v1502 = vld [vmem:[#allocation2 + $0x598] sm:$0xff]
        %v1503 = vld [vmem:[#allocation2 + $0x5a0] sm:$0xff]
        %v1504 = vld [vmem:[#allocation2 + $0x5a8] sm:$0xff]
        %v1505 = vld [vmem:[#allocation2 + $0x5b0] sm:$0xff]
        %v1506 = vld [vmem:[#allocation2 + $0x5b8] sm:$0xff]
        %v1507 = vld [vmem:[#allocation2 + $0x5c0] sm:$0xff]
        %v1508 = vld [vmem:[#allocation2 + $0x5c8] sm:$0xff]
        %v1509 = vld [vmem:[#allocation2 + $0x5d0] sm:$0xff]
        %v1510 = vld [vmem:[#allocation2 + $0x5d8] sm:$0xff]
        %v1511 = vld [vmem:[#allocation2 + $0x5e0] sm:$0xff]
        %v1512 = vpack.c.bf16 %v1330, %v1323
        %v1513 = vpack.c.bf16 %v1331, %v1324
        %v1514 = vpack.c.bf16 %v1332, %v1325
        %v1515 = vpack.c.bf16 %v1333, %v1326
        %v1516 = vpack.c.bf16 %v1334, %v1327
        %v1517 = vpack.c.bf16 %v1335, %v1328
        %v1518 = vpack.c.bf16 %v1336, %v1329
        %v1519 = vpack.c.bf16 %v1344, %v1337
        %v1520 = vpack.c.bf16 %v1345, %v1338
        %v1521 = vpack.c.bf16 %v1346, %v1339
        %v1522 = vpack.c.bf16 %v1347, %v1340
        %v1523 = vpack.c.bf16 %v1348, %v1341
        %v1524 = vpack.c.bf16 %v1349, %v1342
        %v1525 = vpack.c.bf16 %v1350, %v1343
        %v1526 = vpack.c.bf16 %v1358, %v1351
        %v1527 = vpack.c.bf16 %v1359, %v1352
        %v1528 = vpack.c.bf16 %v1360, %v1353
        %v1529 = vpack.c.bf16 %v1361, %v1354
        %v1530 = vpack.c.bf16 %v1362, %v1355
        %v1531 = vpack.c.bf16 %v1363, %v1356
        %v1532 = vpack.c.bf16 %v1364, %v1357
        %v1533 = vpack.c.bf16 %v1372, %v1365
        %v1534 = vpack.c.bf16 %v1373, %v1366
        %v1535 = vpack.c.bf16 %v1374, %v1367
        %v1536 = vpack.c.bf16 %v1375, %v1368
        %v1537 = vpack.c.bf16 %v1376, %v1369
        %v1538 = vpack.c.bf16 %v1377, %v1370
        %v1539 = vpack.c.bf16 %v1378, %v1371
        %v1540 = vpack.c.bf16 %v1386, %v1379
        %v1541 = vpack.c.bf16 %v1387, %v1380
        %v1542 = vpack.c.bf16 %v1388, %v1381
        %v1543 = vpack.c.bf16 %v1389, %v1382
        %v1544 = vpack.c.bf16 %v1390, %v1383
        %v1545 = vpack.c.bf16 %v1391, %v1384
        %v1546 = vpack.c.bf16 %v1392, %v1385
        %v1547 = vpack.c.bf16 %v1400, %v1393
        %v1548 = vpack.c.bf16 %v1401, %v1394
        %v1549 = vpack.c.bf16 %v1402, %v1395
        %v1550 = vpack.c.bf16 %v1403, %v1396
        %v1551 = vpack.c.bf16 %v1404, %v1397
        %v1552 = vpack.c.bf16 %v1405, %v1398
        %v1553 = vpack.c.bf16 %v1406, %v1399
        %v1554 = vpack.c.bf16 %v1414, %v1407
        %v1555 = vpack.c.bf16 %v1415, %v1408
        %v1556 = vpack.c.bf16 %v1416, %v1409
        %v1557 = vpack.c.bf16 %v1417, %v1410
        %v1558 = vpack.c.bf16 %v1418, %v1411
        %v1559 = vpack.c.bf16 %v1419, %v1412
        %v1560 = vpack.c.bf16 %v1420, %v1413
        %v1561 = vpack.c.bf16 %v1428, %v1421
        %v1562 = vpack.c.bf16 %v1429, %v1422
        %v1563 = vpack.c.bf16 %v1430, %v1423
        %v1564 = vpack.c.bf16 %v1431, %v1424
        %v1565 = vpack.c.bf16 %v1432, %v1425
        %v1566 = vpack.c.bf16 %v1433, %v1426
        %v1567 = vpack.c.bf16 %v1434, %v1427
        %v1568 = vpack.c.bf16 %v1442, %v1435
        %v1569 = vpack.c.bf16 %v1443, %v1436
        %v1570 = vpack.c.bf16 %v1444, %v1437
        %v1571 = vpack.c.bf16 %v1445, %v1438
        %v1572 = vpack.c.bf16 %v1446, %v1439
        %v1573 = vpack.c.bf16 %v1447, %v1440
        %v1574 = vpack.c.bf16 %v1448, %v1441
        %v1575 = vpack.c.bf16 %v1456, %v1449
        %v1576 = vpack.c.bf16 %v1457, %v1450
        %v1577 = vpack.c.bf16 %v1458, %v1451
        %v1578 = vpack.c.bf16 %v1459, %v1452
        %v1579 = vpack.c.bf16 %v1460, %v1453
        %v1580 = vpack.c.bf16 %v1461, %v1454
        %v1581 = vpack.c.bf16 %v1462, %v1455
        %v1582 = vpack.c.bf16 %v1470, %v1463
        %v1583 = vpack.c.bf16 %v1471, %v1464
        %v1584 = vpack.c.bf16 %v1472, %v1465
        %v1585 = vpack.c.bf16 %v1473, %v1466
        %v1586 = vpack.c.bf16 %v1474, %v1467
        %v1587 = vpack.c.bf16 %v1475, %v1468
        %v1588 = vpack.c.bf16 %v1476, %v1469
        %v1589 = vpack.c.bf16 %v1484, %v1477
        %v1590 = vpack.c.bf16 %v1485, %v1478
        %v1591 = vpack.c.bf16 %v1486, %v1479
        %v1592 = vpack.c.bf16 %v1487, %v1480
        %v1593 = vpack.c.bf16 %v1488, %v1481
        %v1594 = vpack.c.bf16 %v1489, %v1482
        %v1595 = vpack.c.bf16 %v1490, %v1483
        %v1596 = vpack.c.bf16 %v1498, %v1491
        %v1597 = vpack.c.bf16 %v1499, %v1492
        %v1598 = vpack.c.bf16 %v1500, %v1493
        %v1599 = vpack.c.bf16 %v1501, %v1494
        %v1600 = vpack.c.bf16 %v1502, %v1495
        %v1601 = vpack.c.bf16 %v1503, %v1496
        %v1602 = vpack.c.bf16 %v1504, %v1497
        %v1603 = vpack.c.bf16 %v1505, %v1505
        %v1604 = vpack.c.bf16 %v1506, %v1506
        %v1605 = vpack.c.bf16 %v1507, %v1507
        %v1606 = vpack.c.bf16 %v1508, %v1508
        %v1607 = vpack.c.bf16 %v1509, %v1509
        %v1608 = vpack.c.bf16 %v1510, %v1510
        %v1609 = vpack.c.bf16 %v1511, %v1511
        %v1612 = vunpack.c.l.b16 %v1321
        %v1613 = vunpack.c.h.b16 %v1321
        %v1614 = vunpack.c.l.b16 %v1322
        %v1615 = vunpack.c.h.b16 %v1322
        %v1616 = vpack.c.b16 %v1614, %v1612
        %v1617 = vpack.c.b16 %v1615, %v1613
        %vm1619 = vcmask 719872
        %v1621 = vsel %vm1619, %v1617, 0
        %vm1623 = vcmask 1043456
        %v1625 = vsel %vm1623, %v1603, 0
        %v1628 = vsel %vm1623, %v1604, 0
        %v1631 = vsel %vm1623, %v1605, 0
        %v1634 = vsel %vm1623, %v1606, 0
        %v1637 = vsel %vm1623, %v1607, 0
        %v1640 = vsel %vm1623, %v1608, 0
        %v1643 = vsel %vm1623, %v1609, 0
        %1645 = vmatprep.subr.bf16.mxu0 %v1513
        %1646 = vmatpush1.bf16.msra.mxu0 %v1512
        %1647 = vmatprep.subr.bf16.mxu0 %v1520
        %1648 = vmatpush1.bf16.msra.mxu0 %v1519
        %1649 = vmatprep.subr.bf16.mxu0 %v1527
        %1650 = vmatpush1.bf16.msra.mxu0 %v1526
        %1651 = vmatprep.subr.bf16.mxu0 %v1534
        %1652 = vmatpush1.bf16.msra.mxu0 %v1533
        %1653 = vmatprep.subr.bf16.mxu0 %v1541
        %1654 = vmatpush1.bf16.msra.mxu0 %v1540
        %1655 = vmatprep.subr.bf16.mxu0 %v1548
        %1656 = vmatpush1.bf16.msra.mxu0 %v1547
        %1657 = vmatprep.subr.bf16.mxu0 %v1555
        %1658 = vmatpush1.bf16.msra.mxu0 %v1554
        %1659 = vmatprep.subr.bf16.mxu0 %v1562
        %1660 = vmatpush1.bf16.msra.mxu0 %v1561
        %1661 = vmatprep.subr.bf16.mxu0 %v1569
        %1662 = vmatpush1.bf16.msra.mxu0 %v1568
        %1663 = vmatprep.subr.bf16.mxu0 %v1576
        %1664 = vmatpush1.bf16.msra.mxu0 %v1575
        %1665 = vmatprep.subr.bf16.mxu0 %v1583
        %1666 = vmatpush1.bf16.msra.mxu0 %v1582
        %1667 = vmatprep.subr.bf16.mxu0 %v1590
        %1668 = vmatpush1.bf16.msra.mxu0 %v1589
        %1669 = vmatprep.subr.bf16.mxu0 %v1597
        %1670 = vmatpush1.bf16.msra.mxu0 %v1596
        %1671 = vmatprep.subr.bf16.mxu0 %v1628
        %1672 = vmatpush1.bf16.msra.mxu0 %v1625
        %1673 = vmatprep.subr.bf16.mxu0 0
        %1674 = vmatpush1.bf16.msra.mxu0 0
        %1675 = vmatprep.subr.bf16.mxu0 0
        %1676 = vmatpush1.bf16.msra.mxu0 0
        %1677 = vmatprep.mubr.bf16.mxu0 %v1621
        %1678 = vmatmul.mubr.bf16.gmra.mrb[0].mxu0 %v1616
        %v1679 = vpop.f32.mrb[0].mxu0
        %v1680 = vadd.f32 0.0, %v1679
        %v1681 = vpop.f32.mrb[0].mxu0
        %v1682 = vadd.f32 0.0, %v1681
        %v1683 = vpop.f32.mrb[0].mxu0
        %v1684 = vadd.f32 0.0, %v1683
        %v1685 = vpop.f32.mrb[0].mxu0
        %v1686 = vadd.f32 0.0, %v1685
        %1687 = vdwg.mxu0
        %1688 = vmatprep.subr.bf16.mxu0 %v1515
        %1689 = vmatpush1.bf16.msra.mxu0 %v1514
        %1690 = vmatprep.subr.bf16.mxu0 %v1522
        %1691 = vmatpush1.bf16.msra.mxu0 %v1521
        %1692 = vmatprep.subr.bf16.mxu0 %v1529
        %1693 = vmatpush1.bf16.msra.mxu0 %v1528
        %1694 = vmatprep.subr.bf16.mxu0 %v1536
        %1695 = vmatpush1.bf16.msra.mxu0 %v1535
        %1696 = vmatprep.subr.bf16.mxu0 %v1543
        %1697 = vmatpush1.bf16.msra.mxu0 %v1542
        %1698 = vmatprep.subr.bf16.mxu0 %v1550
        %1699 = vmatpush1.bf16.msra.mxu0 %v1549
        %1700 = vmatprep.subr.bf16.mxu0 %v1557
        %1701 = vmatpush1.bf16.msra.mxu0 %v1556
        %1702 = vmatprep.subr.bf16.mxu0 %v1564
        %1703 = vmatpush1.bf16.msra.mxu0 %v1563
        %1704 = vmatprep.subr.bf16.mxu0 %v1571
        %1705 = vmatpush1.bf16.msra.mxu0 %v1570
        %1706 = vmatprep.subr.bf16.mxu0 %v1578
        %1707 = vmatpush1.bf16.msra.mxu0 %v1577
        %1708 = vmatprep.subr.bf16.mxu0 %v1585
        %1709 = vmatpush1.bf16.msra.mxu0 %v1584
        %1710 = vmatprep.subr.bf16.mxu0 %v1592
        %1711 = vmatpush1.bf16.msra.mxu0 %v1591
        %1712 = vmatprep.subr.bf16.mxu0 %v1599
        %1713 = vmatpush1.bf16.msra.mxu0 %v1598
        %1714 = vmatprep.subr.bf16.mxu0 %v1634
        %1715 = vmatpush1.bf16.msra.mxu0 %v1631
        %1716 = vmatprep.subr.bf16.mxu0 0
        %1717 = vmatpush1.bf16.msra.mxu0 0
        %1718 = vmatprep.subr.bf16.mxu0 0
        %1719 = vmatpush1.bf16.msra.mxu0 0
        %1720 = vmatprep.mubr.bf16.mxu0 %v1621
        %1721 = vmatmul.mubr.bf16.gmra.mrb[0].mxu0 %v1616
        %v1722 = vpop.f32.mrb[0].mxu0
        %v1723 = vadd.f32 0.0, %v1722
        %v1724 = vpop.f32.mrb[0].mxu0
        %v1725 = vadd.f32 0.0, %v1724
        %v1726 = vpop.f32.mrb[0].mxu0
        %v1727 = vadd.f32 0.0, %v1726
        %v1728 = vpop.f32.mrb[0].mxu0
        %v1729 = vadd.f32 0.0, %v1728
        %1730 = vdwg.mxu0
        %1731 = vmatprep.subr.bf16.mxu0 %v1517
        %1732 = vmatpush1.bf16.msra.mxu0 %v1516
        %1733 = vmatprep.subr.bf16.mxu0 %v1524
        %1734 = vmatpush1.bf16.msra.mxu0 %v1523
        %1735 = vmatprep.subr.bf16.mxu0 %v1531
        %1736 = vmatpush1.bf16.msra.mxu0 %v1530
        %1737 = vmatprep.subr.bf16.mxu0 %v1538
        %1738 = vmatpush1.bf16.msra.mxu0 %v1537
        %1739 = vmatprep.subr.bf16.mxu0 %v1545
        %1740 = vmatpush1.bf16.msra.mxu0 %v1544
        %1741 = vmatprep.subr.bf16.mxu0 %v1552
        %1742 = vmatpush1.bf16.msra.mxu0 %v1551
        %1743 = vmatprep.subr.bf16.mxu0 %v1559
        %1744 = vmatpush1.bf16.msra.mxu0 %v1558
        %1745 = vmatprep.subr.bf16.mxu0 %v1566
        %1746 = vmatpush1.bf16.msra.mxu0 %v1565
        %1747 = vmatprep.subr.bf16.mxu0 %v1573
        %1748 = vmatpush1.bf16.msra.mxu0 %v1572
        %1749 = vmatprep.subr.bf16.mxu0 %v1580
        %1750 = vmatpush1.bf16.msra.mxu0 %v1579
        %1751 = vmatprep.subr.bf16.mxu0 %v1587
        %1752 = vmatpush1.bf16.msra.mxu0 %v1586
        %1753 = vmatprep.subr.bf16.mxu0 %v1594
        %1754 = vmatpush1.bf16.msra.mxu0 %v1593
        %1755 = vmatprep.subr.bf16.mxu0 %v1601
        %1756 = vmatpush1.bf16.msra.mxu0 %v1600
        %1757 = vmatprep.subr.bf16.mxu0 %v1640
        %1758 = vmatpush1.bf16.msra.mxu0 %v1637
        %1759 = vmatprep.subr.bf16.mxu0 0
        %1760 = vmatpush1.bf16.msra.mxu0 0
        %1761 = vmatprep.subr.bf16.mxu0 0
        %1762 = vmatpush1.bf16.msra.mxu0 0
        %1763 = vmatprep.mubr.bf16.mxu0 %v1621
        %1764 = vmatmul.mubr.bf16.gmra.mrb[0].mxu0 %v1616
        %v1765 = vpop.f32.mrb[0].mxu0
        %v1766 = vadd.f32 0.0, %v1765
        %v1767 = vpop.f32.mrb[0].mxu0
        %v1768 = vadd.f32 0.0, %v1767
        %v1769 = vpop.f32.mrb[0].mxu0
        %v1770 = vadd.f32 0.0, %v1769
        %v1771 = vpop.f32.mrb[0].mxu0
        %v1772 = vadd.f32 0.0, %v1771
        %1773 = vdwg.mxu0
        %1774 = vmatprep.subr.bf16.mxu0 0
        %1775 = vmatpush1.bf16.msra.mxu0 %v1518
        %1776 = vmatprep.subr.bf16.mxu0 0
        %1777 = vmatpush1.bf16.msra.mxu0 %v1525
        %1778 = vmatprep.subr.bf16.mxu0 0
        %1779 = vmatpush1.bf16.msra.mxu0 %v1532
        %1780 = vmatprep.subr.bf16.mxu0 0
        %1781 = vmatpush1.bf16.msra.mxu0 %v1539
        %1782 = vmatprep.subr.bf16.mxu0 0
        %1783 = vmatpush1.bf16.msra.mxu0 %v1546
        %1784 = vmatprep.subr.bf16.mxu0 0
        %1785 = vmatpush1.bf16.msra.mxu0 %v1553
        %1786 = vmatprep.subr.bf16.mxu0 0
        %1787 = vmatpush1.bf16.msra.mxu0 %v1560
        %1788 = vmatprep.subr.bf16.mxu0 0
        %1789 = vmatpush1.bf16.msra.mxu0 %v1567
        %1790 = vmatprep.subr.bf16.mxu0 0
        %1791 = vmatpush1.bf16.msra.mxu0 %v1574
        %1792 = vmatprep.subr.bf16.mxu0 0
        %1793 = vmatpush1.bf16.msra.mxu0 %v1581
        %1794 = vmatprep.subr.bf16.mxu0 0
        %1795 = vmatpush1.bf16.msra.mxu0 %v1588
        %1796 = vmatprep.subr.bf16.mxu0 0
        %1797 = vmatpush1.bf16.msra.mxu0 %v1595
        %1798 = vmatprep.subr.bf16.mxu0 0
        %1799 = vmatpush1.bf16.msra.mxu0 %v1602
        %1800 = vmatprep.subr.bf16.mxu0 0
        %1801 = vmatpush1.bf16.msra.mxu0 %v1643
        %1802 = vmatprep.subr.bf16.mxu0 0
        %1803 = vmatpush1.bf16.msra.mxu0 0
        %1804 = vmatprep.subr.bf16.mxu0 0
        %1805 = vmatpush1.bf16.msra.mxu0 0
        %1806 = vmatprep.mubr.bf16.mxu0 %v1621
        %1807 = vmatmul.mubr.bf16.gmra.mrb[0].mxu0 %v1616
        %v1808 = vpop.f32.mrb[0].mxu0
        %v1809 = vadd.f32 0.0, %v1808
        %v1810 = vpop.f32.mrb[0].mxu0
        %v1811 = vpop.f32.mrb[0].mxu0
        %v1812 = vadd.f32 0.0, %v1811
        %v1813 = vpop.f32.mrb[0].mxu0
        %1814 = vdwg.mxu0
        %v1815 = vld [vmem:[%s4] sm:$0x7f]
        %v1816 = vld [vmem:[%s2] sm:$0xff]
        %v1817 = vld [vmem:[%s2 + $0x8] sm:$0xff]
        %v1818 = vld [vmem:[#allocation3] sm:$0xff]
        %v1819 = vld [vmem:[#allocation3 + $0x8] sm:$0xff]
        %v1821 = vlaneseq
        %v1822 = vshrl.u32 %v1821, 7
        %v1823 = vsub.s32 0, %v1822
        %v1824 = vrot.slane %v1815, %v1823
        %v1825 = vlaneseq
        %v1826 = vshrl.u32 %v1825, 7
        %v1827 = vsub.s32 1, %v1826
        %v1828 = vrot.slane %v1815, %v1827
        %v1829 = vlaneseq
        %v1830 = vshrl.u32 %v1829, 7
        %v1831 = vsub.s32 2, %v1830
        %v1832 = vrot.slane %v1815, %v1831
        %v1833 = vlaneseq
        %v1834 = vshrl.u32 %v1833, 7
        %v1835 = vsub.s32 3, %v1834
        %v1836 = vrot.slane %v1815, %v1835
        %v1837 = vlaneseq
        %v1838 = vshrl.u32 %v1837, 7
        %v1839 = vsub.s32 4, %v1838
        %v1840 = vrot.slane %v1815, %v1839
        %v1841 = vlaneseq
        %v1842 = vshrl.u32 %v1841, 7
        %v1843 = vsub.s32 5, %v1842
        %v1844 = vrot.slane %v1815, %v1843
        %v1845 = vlaneseq
        %v1846 = vshrl.u32 %v1845, 7
        %v1847 = vsub.s32 6, %v1846
        %v1848 = vrot.slane %v1815, %v1847
        %v1856 = vmul.f32 %v1680, %v1824
        %v1857 = vmul.f32 %v1682, %v1828
        %v1858 = vmul.f32 %v1723, %v1832
        %v1859 = vmul.f32 %v1725, %v1836
        %v1860 = vmul.f32 %v1766, %v1840
        %v1861 = vmul.f32 %v1768, %v1844
        %v1862 = vmul.f32 %v1809, %v1848
        %v1863 = vmul.f32 %v1684, %v1824
        %v1864 = vmul.f32 %v1686, %v1828
        %v1865 = vmul.f32 %v1727, %v1832
        %v1866 = vmul.f32 %v1729, %v1836
        %v1867 = vmul.f32 %v1770, %v1840
        %v1868 = vmul.f32 %v1772, %v1844
        %v1869 = vmul.f32 %v1812, %v1848
        %v1870 = vadd.f32 %v1856, %v1857
        %v1871 = vadd.f32 %v1870, %v1858
        %v1872 = vadd.f32 %v1871, %v1859
        %v1873 = vadd.f32 %v1872, %v1860
        %v1874 = vadd.f32 %v1873, %v1861
        %v1875 = vsel %vm350, %v1862, 0.0
        %v1876 = vadd.f32 %v1874, %v1875
        %1877 = vadd.xlane.f32.xlu0 %v1876
        %v1878 = vpop.xlane.xlu0 %1877
        %v1879 = vadd.f32 %v1863, %v1864
        %v1880 = vadd.f32 %v1879, %v1865
        %v1881 = vadd.f32 %v1880, %v1866
        %v1882 = vadd.f32 %v1881, %v1867
        %v1883 = vadd.f32 %v1882, %v1868
        %v1884 = vsel %vm350, %v1869, 0.0
        %v1885 = vadd.f32 %v1883, %v1884
        %1886 = vadd.xlane.f32.xlu0 %v1885
        %v1887 = vpop.xlane.xlu0 %1886
        %v1888 = vmul.f32 %v1816, 512.0
        %v1889 = vmul.f32 %v1817, 512.0
        %v1890 = vadd.f32 %v1878, %v1888
        %v1891 = vadd.f32 %v1887, %v1889
        %v1893 = vsel %vm847, %v1818, 0
        %v1896 = vsel %vm847, %v1819, 0
        %1898 = vmatprep.subr.mxu0 0.0
        %1899 = vmatpush1.msra.mxu0 %v1890
        %1900 = vmatprep.subr.mxu0 0.0
        %1901 = vmatpush1.msra.mxu0 %v1891
        %1902 = vmatprep.subr.mxu0 0.0
        %1903 = vmatpush1.msra.mxu0 0.0
        %1904 = vmatprep.subr.mxu0 0.0
        %1905 = vmatpush1.msra.mxu0 0.0
        %1906 = vmatprep.subr.mxu0 0.0
        %1907 = vmatpush1.msra.mxu0 0.0
        %1908 = vmatprep.subr.mxu0 0.0
        %1909 = vmatpush1.msra.mxu0 0.0
        %1910 = vmatprep.subr.mxu0 0.0
        %1911 = vmatpush1.msra.mxu0 0.0
        %1912 = vmatprep.subr.mxu0 0.0
        %1913 = vmatpush1.msra.mxu0 0.0
        %1914 = vmatprep.subr.mxu0 0.0
        %1915 = vmatpush1.msra.mxu0 0.0
        %1916 = vmatprep.subr.mxu0 0.0
        %1917 = vmatpush1.msra.mxu0 0.0
        %1918 = vmatprep.subr.mxu0 0.0
        %1919 = vmatpush1.msra.mxu0 0.0
        %1920 = vmatprep.subr.mxu0 0.0
        %1921 = vmatpush1.msra.mxu0 0.0
        %1922 = vmatprep.subr.mxu0 0.0
        %1923 = vmatpush1.msra.mxu0 0.0
        %1924 = vmatprep.subr.mxu0 0.0
        %1925 = vmatpush1.msra.mxu0 0.0
        %1926 = vmatprep.subr.mxu0 0.0
        %1927 = vmatpush1.msra.mxu0 0.0
        %1928 = vmatprep.subr.mxu0 0.0
        %1929 = vmatpush1.msra.mxu0 0.0
        %1930 = vmatprep.subr.mxu0 0.0
        %1931 = vmatpush1.msra.mxu0 0.0
        %1932 = vmatprep.subr.mxu0 0.0
        %1933 = vmatpush1.msra.mxu0 0.0
        %1934 = vmatprep.subr.mxu0 0.0
        %1935 = vmatpush1.msra.mxu0 0.0
        %1936 = vmatprep.subr.mxu0 0.0
        %1937 = vmatpush1.msra.mxu0 0.0
        %1938 = vmatprep.subr.mxu0 0.0
        %1939 = vmatpush1.msra.mxu0 0.0
        %1940 = vmatprep.subr.mxu0 0.0
        %1941 = vmatpush1.msra.mxu0 0.0
        %1942 = vmatprep.subr.mxu0 0.0
        %1943 = vmatpush1.msra.mxu0 0.0
        %1944 = vmatprep.subr.mxu0 0.0
        %1945 = vmatpush1.msra.mxu0 0.0
        %1946 = vmatprep.subr.mxu0 0.0
        %1947 = vmatpush1.msra.mxu0 0.0
        %1948 = vmatprep.subr.mxu0 0.0
        %1949 = vmatpush1.msra.mxu0 0.0
        %1950 = vmatprep.subr.mxu0 0.0
        %1951 = vmatpush1.msra.mxu0 0.0
        %1952 = vmatprep.subr.mxu0 0.0
        %1953 = vmatpush1.msra.mxu0 0.0
        %1954 = vmatprep.subr.mxu0 0.0
        %1955 = vmatpush1.msra.mxu0 0.0
        %1956 = vmatprep.subr.mxu0 0.0
        %1957 = vmatpush1.msra.mxu0 0.0
        %1958 = vmatprep.subr.mxu0 0.0
        %1959 = vmatpush1.msra.mxu0 0.0
        %1960 = vmatprep.subr.mxu0 0.0
        %1961 = vmatpush1.msra.mxu0 0.0
        %1962 = vmatprep.mubr.f32.mxu0 0.0
        %1963 = vmatmul.mubr.f32.gmra.mrb[0].mxu0 %v1893
        %v1964 = vpop.f32.mrb[0].mxu0
        %v1965 = vadd.f32 0.0, %v1964
        %v1966 = vpop.f32.mrb[0].mxu0
        %1967 = vmatprep.mubr.f32.mxu0 0.0
        %1968 = vmatmul.mubr.f32.gmra.mrb[0].mxu0 %v1896
        %v1969 = vpop.f32.mrb[0].mxu0
        %v1970 = vadd.f32 0.0, %v1969
        %v1971 = vpop.f32.mrb[0].mxu0
        %1972 = vdwg.mxu0
        %v1973 = vmul.f32 %v1965, 0.0009765625
        %v1974 = vmul.f32 %v1970, 0.0009765625
        %v1975 = vsub.f32 %v1973, %v1816
        %v1976 = vsub.f32 %v1974, %v1817
        %1978 = vset.pattern.permute.xlu0 0
        %1979 = vperm.xlu0 %1978, %v1975
        %v1980 = vpop.permute.xlu0 %1979
        %1983 = vset.pattern.permute.xlu0 0
        %1984 = vperm.xlu0 %1983, %v1976
        %v1985 = vpop.permute.xlu0 %1984
        %v1987 = vsub.f32 %v1680, %v1980
        %v1988 = vsub.f32 %v1682, %v1980
        %v1989 = vsub.f32 %v1723, %v1980
        %v1990 = vsub.f32 %v1725, %v1980
        %v1991 = vsub.f32 %v1766, %v1980
        %v1992 = vsub.f32 %v1768, %v1980
        %v1993 = vsub.f32 %v1809, %v1980
        %v1994 = vsub.f32 %v1684, %v1985
        %v1995 = vsub.f32 %v1686, %v1985
        %v1996 = vsub.f32 %v1727, %v1985
        %v1997 = vsub.f32 %v1729, %v1985
        %v1998 = vsub.f32 %v1770, %v1985
        %v1999 = vsub.f32 %v1772, %v1985
        %v2000 = vsub.f32 %v1812, %v1985
        %v2001 = vmul.f32 %v1987, %v1987
        %v2002 = vmul.f32 %v1988, %v1988
        %v2003 = vmul.f32 %v1989, %v1989
        %v2004 = vmul.f32 %v1990, %v1990
        %v2005 = vmul.f32 %v1991, %v1991
        %v2006 = vmul.f32 %v1992, %v1992
        %v2007 = vmul.f32 %v1993, %v1993
        %v2008 = vmul.f32 %v1994, %v1994
        %v2009 = vmul.f32 %v1995, %v1995
        %v2010 = vmul.f32 %v1996, %v1996
        %v2011 = vmul.f32 %v1997, %v1997
        %v2012 = vmul.f32 %v1998, %v1998
        %v2013 = vmul.f32 %v1999, %v1999
        %v2014 = vmul.f32 %v2000, %v2000
        %v2015 = vmul.f32 %v2001, %v1824
        %v2016 = vmul.f32 %v2002, %v1828
        %v2017 = vmul.f32 %v2003, %v1832
        %v2018 = vmul.f32 %v2004, %v1836
        %v2019 = vmul.f32 %v2005, %v1840
        %v2020 = vmul.f32 %v2006, %v1844
        %v2021 = vmul.f32 %v2007, %v1848
        %v2022 = vmul.f32 %v2008, %v1824
        %v2023 = vmul.f32 %v2009, %v1828
        %v2024 = vmul.f32 %v2010, %v1832
        %v2025 = vmul.f32 %v2011, %v1836
        %v2026 = vmul.f32 %v2012, %v1840
        %v2027 = vmul.f32 %v2013, %v1844
        %v2028 = vmul.f32 %v2014, %v1848
        %v2029 = vadd.f32 %v2015, %v2016
        %v2030 = vadd.f32 %v2029, %v2017
        %v2031 = vadd.f32 %v2030, %v2018
        %v2032 = vadd.f32 %v2031, %v2019
        %v2033 = vadd.f32 %v2032, %v2020
        %v2034 = vsel %vm350, %v2021, 0.0
        %v2035 = vadd.f32 %v2033, %v2034
        %2036 = vadd.xlane.f32.xlu0 %v2035
        %v2037 = vpop.xlane.xlu0 %2036
        %v2038 = vadd.f32 %v2022, %v2023
        %v2039 = vadd.f32 %v2038, %v2024
        %v2040 = vadd.f32 %v2039, %v2025
        %v2041 = vadd.f32 %v2040, %v2026
        %v2042 = vadd.f32 %v2041, %v2027
        %v2043 = vsel %vm350, %v2028, 0.0
        %v2044 = vadd.f32 %v2042, %v2043
        %2045 = vadd.xlane.f32.xlu0 %v2044
        %v2046 = vpop.xlane.xlu0 %2045
        %2047 = vmatprep.subr.mxu0 0.0
        %2048 = vmatpush1.msra.mxu0 %v2037
        %2049 = vmatprep.subr.mxu0 0.0
        %2050 = vmatpush1.msra.mxu0 %v2046
        %2051 = vmatprep.subr.mxu0 0.0
        %2052 = vmatpush1.msra.mxu0 0.0
        %2053 = vmatprep.subr.mxu0 0.0
        %2054 = vmatpush1.msra.mxu0 0.0
        %2055 = vmatprep.subr.mxu0 0.0
        %2056 = vmatpush1.msra.mxu0 0.0
        %2057 = vmatprep.subr.mxu0 0.0
        %2058 = vmatpush1.msra.mxu0 0.0
        %2059 = vmatprep.subr.mxu0 0.0
        %2060 = vmatpush1.msra.mxu0 0.0
        %2061 = vmatprep.subr.mxu0 0.0
        %2062 = vmatpush1.msra.mxu0 0.0
        %2063 = vmatprep.subr.mxu0 0.0
        %2064 = vmatpush1.msra.mxu0 0.0
        %2065 = vmatprep.subr.mxu0 0.0
        %2066 = vmatpush1.msra.mxu0 0.0
        %2067 = vmatprep.subr.mxu0 0.0
        %2068 = vmatpush1.msra.mxu0 0.0
        %2069 = vmatprep.subr.mxu0 0.0
        %2070 = vmatpush1.msra.mxu0 0.0
        %2071 = vmatprep.subr.mxu0 0.0
        %2072 = vmatpush1.msra.mxu0 0.0
        %2073 = vmatprep.subr.mxu0 0.0
        %2074 = vmatpush1.msra.mxu0 0.0
        %2075 = vmatprep.subr.mxu0 0.0
        %2076 = vmatpush1.msra.mxu0 0.0
        %2077 = vmatprep.subr.mxu0 0.0
        %2078 = vmatpush1.msra.mxu0 0.0
        %2079 = vmatprep.subr.mxu0 0.0
        %2080 = vmatpush1.msra.mxu0 0.0
        %2081 = vmatprep.subr.mxu0 0.0
        %2082 = vmatpush1.msra.mxu0 0.0
        %2083 = vmatprep.subr.mxu0 0.0
        %2084 = vmatpush1.msra.mxu0 0.0
        %2085 = vmatprep.subr.mxu0 0.0
        %2086 = vmatpush1.msra.mxu0 0.0
        %2087 = vmatprep.subr.mxu0 0.0
        %2088 = vmatpush1.msra.mxu0 0.0
        %2089 = vmatprep.subr.mxu0 0.0
        %2090 = vmatpush1.msra.mxu0 0.0
        %2091 = vmatprep.subr.mxu0 0.0
        %2092 = vmatpush1.msra.mxu0 0.0
        %2093 = vmatprep.subr.mxu0 0.0
        %2094 = vmatpush1.msra.mxu0 0.0
        %2095 = vmatprep.subr.mxu0 0.0
        %2096 = vmatpush1.msra.mxu0 0.0
        %2097 = vmatprep.subr.mxu0 0.0
        %2098 = vmatpush1.msra.mxu0 0.0
        %2099 = vmatprep.subr.mxu0 0.0
        %2100 = vmatpush1.msra.mxu0 0.0
        %2101 = vmatprep.subr.mxu0 0.0
        %2102 = vmatpush1.msra.mxu0 0.0
        %2103 = vmatprep.subr.mxu0 0.0
        %2104 = vmatpush1.msra.mxu0 0.0
        %2105 = vmatprep.subr.mxu0 0.0
        %2106 = vmatpush1.msra.mxu0 0.0
        %2107 = vmatprep.subr.mxu0 0.0
        %2108 = vmatpush1.msra.mxu0 0.0
        %2109 = vmatprep.subr.mxu0 0.0
        %2110 = vmatpush1.msra.mxu0 0.0
        %2111 = vmatprep.mubr.f32.mxu0 0.0
        %2112 = vmatmul.mubr.f32.gmra.mrb[0].mxu0 %v1893
        %v2113 = vpop.f32.mrb[0].mxu0
        %v2114 = vadd.f32 0.0, %v2113
        %v2115 = vpop.f32.mrb[0].mxu0
        %2116 = vmatprep.mubr.f32.mxu0 0.0
        %2117 = vmatmul.mubr.f32.gmra.mrb[0].mxu0 %v1896
        %v2118 = vpop.f32.mrb[0].mxu0
        %v2119 = vadd.f32 0.0, %v2118
        %v2120 = vpop.f32.mrb[0].mxu0
        %2121 = vdwg.mxu0
        %v2122 = vmul.f32 %v2114, 0.0009765625
        %v2123 = vmul.f32 %v2119, 0.0009765625
        %v2124 = vadd.f32 %v2122, 1e-05
        %v2125 = vadd.f32 %v2123, 1e-05
        %v2126 = vrsqrt.pop %v2124
        %v2127 = vrsqrt.pop %v2125
        %v2128 = vld [vmem:[%s326] sm:$0xff]
        %v2129 = vld [vmem:[%s326 + $0x8] sm:$0xff]
        %v2130 = vmul.f32 %v2126, %v2128
        %v2131 = vmul.f32 %v2127, %v2129
        %2133 = vset.pattern.permute.xlu0 0
        %2134 = vperm.xlu0 %2133, %v2130
        %v2135 = vpop.permute.xlu0 %2134
        %2138 = vset.pattern.permute.xlu0 0
        %2139 = vperm.xlu0 %2138, %v2131
        %v2140 = vpop.permute.xlu0 %2139
        %v2142 = vmul.f32 %v1987, %v2135
        %v2143 = vmul.f32 %v1988, %v2135
        %v2144 = vmul.f32 %v1989, %v2135
        %v2145 = vmul.f32 %v1990, %v2135
        %v2146 = vmul.f32 %v1991, %v2135
        %v2147 = vmul.f32 %v1992, %v2135
        %v2148 = vmul.f32 %v1993, %v2135
        %v2149 = vmul.f32 %v1994, %v2140
        %v2150 = vmul.f32 %v1995, %v2140
        %v2151 = vmul.f32 %v1996, %v2140
        %v2152 = vmul.f32 %v1997, %v2140
        %v2153 = vmul.f32 %v1998, %v2140
        %v2154 = vmul.f32 %v1999, %v2140
        %v2155 = vmul.f32 %v2000, %v2140
        %v2156 = vld [vmem:[%s331] sm:$0xff]
        %v2157 = vld [vmem:[%s331 + $0x8] sm:$0xff]
        %2159 = vset.pattern.permute.xlu0 0
        %2160 = vperm.xlu0 %2159, %v2156
        %v2161 = vpop.permute.xlu0 %2160
        %2164 = vset.pattern.permute.xlu0 0
        %2165 = vperm.xlu0 %2164, %v2157
        %v2166 = vpop.permute.xlu0 %2165
        %v2168 = vadd.f32 %v2142, %v2161
        %v2169 = vadd.f32 %v2143, %v2161
        %v2170 = vadd.f32 %v2144, %v2161
        %v2171 = vadd.f32 %v2145, %v2161
        %v2172 = vadd.f32 %v2146, %v2161
        %v2173 = vadd.f32 %v2147, %v2161
        %v2174 = vadd.f32 %v2148, %v2161
        %v2175 = vadd.f32 %v2149, %v2166
        %v2176 = vadd.f32 %v2150, %v2166
        %v2177 = vadd.f32 %v2151, %v2166
        %v2178 = vadd.f32 %v2152, %v2166
        %v2179 = vadd.f32 %v2153, %v2166
        %v2180 = vadd.f32 %v2154, %v2166
        %v2181 = vadd.f32 %v2155, %v2166
        %v2182 = vsub.f32 0.0, %v2168
        %v2183 = vsub.f32 0.0, %v2169
        %v2184 = vsub.f32 0.0, %v2170
        %v2185 = vsub.f32 0.0, %v2171
        %v2186 = vsub.f32 0.0, %v2172
        %v2187 = vsub.f32 0.0, %v2173
        %v2188 = vsub.f32 0.0, %v2174
        %v2189 = vsub.f32 0.0, %v2175
        %v2190 = vsub.f32 0.0, %v2176
        %v2191 = vsub.f32 0.0, %v2177
        %v2192 = vsub.f32 0.0, %v2178
        %v2193 = vsub.f32 0.0, %v2179
        %v2194 = vsub.f32 0.0, %v2180
        %v2195 = vsub.f32 0.0, %v2181
        %v2196 = vmul.f32 %v2182, 1.442695
        %v2197 = vpow.pop %v2196
        %v2198 = vmul.f32 %v2183, 1.442695
        %v2199 = vpow.pop %v2198
        %v2200 = vmul.f32 %v2184, 1.442695
        %v2201 = vpow.pop %v2200
        %v2202 = vmul.f32 %v2185, 1.442695
        %v2203 = vpow.pop %v2202
        %v2204 = vmul.f32 %v2186, 1.442695
        %v2205 = vpow.pop %v2204
        %v2206 = vmul.f32 %v2187, 1.442695
        %v2207 = vpow.pop %v2206
        %v2208 = vmul.f32 %v2188, 1.442695
        %v2209 = vpow.pop %v2208
        %v2210 = vmul.f32 %v2189, 1.442695
        %v2211 = vpow.pop %v2210
        %v2212 = vmul.f32 %v2190, 1.442695
        %v2213 = vpow.pop %v2212
        %v2214 = vmul.f32 %v2191, 1.442695
        %v2215 = vpow.pop %v2214
        %v2216 = vmul.f32 %v2192, 1.442695
        %v2217 = vpow.pop %v2216
        %v2218 = vmul.f32 %v2193, 1.442695
        %v2219 = vpow.pop %v2218
        %v2220 = vmul.f32 %v2194, 1.442695
        %v2221 = vpow.pop %v2220
        %v2222 = vmul.f32 %v2195, 1.442695
        %v2223 = vpow.pop %v2222
        %v2224 = vadd.f32 %v2197, 1.0
        %v2225 = vadd.f32 %v2199, 1.0
        %v2226 = vadd.f32 %v2201, 1.0
        %v2227 = vadd.f32 %v2203, 1.0
        %v2228 = vadd.f32 %v2205, 1.0
        %v2229 = vadd.f32 %v2207, 1.0
        %v2230 = vadd.f32 %v2209, 1.0
        %v2231 = vadd.f32 %v2211, 1.0
        %v2232 = vadd.f32 %v2213, 1.0
        %v2233 = vadd.f32 %v2215, 1.0
        %v2234 = vadd.f32 %v2217, 1.0
        %v2235 = vadd.f32 %v2219, 1.0
        %v2236 = vadd.f32 %v2221, 1.0
        %v2237 = vadd.f32 %v2223, 1.0
        %v2238 = vrcp.pop %v2224
        %v2239 = vrcp.pop %v2225
        %v2240 = vrcp.pop %v2226
        %v2241 = vrcp.pop %v2227
        %v2242 = vrcp.pop %v2228
        %v2243 = vrcp.pop %v2229
        %v2244 = vrcp.pop %v2230
        %v2245 = vrcp.pop %v2231
        %v2246 = vrcp.pop %v2232
        %v2247 = vrcp.pop %v2233
        %v2248 = vrcp.pop %v2234
        %v2249 = vrcp.pop %v2235
        %v2250 = vrcp.pop %v2236
        %v2251 = vrcp.pop %v2237
        %v2252 = vmul.f32 %v2168, %v2238
        %v2253 = vmul.f32 %v2169, %v2239
        %v2254 = vmul.f32 %v2170, %v2240
        %v2255 = vmul.f32 %v2171, %v2241
        %v2256 = vmul.f32 %v2172, %v2242
        %v2257 = vmul.f32 %v2173, %v2243
        %v2258 = vmul.f32 %v2174, %v2244
        %v2259 = vmul.f32 %v2175, %v2245
        %v2260 = vmul.f32 %v2176, %v2246
        %v2261 = vmul.f32 %v2177, %v2247
        %v2262 = vmul.f32 %v2178, %v2248
        %v2263 = vmul.f32 %v2179, %v2249
        %v2264 = vmul.f32 %v2180, %v2250
        %v2265 = vmul.f32 %v2181, %v2251
        %2266 = vst [vmem:[%s316] sm:$0xff] %v2252
        %2267 = vst [vmem:[%s316 + $0x8] sm:$0xff] %v2253
        %2268 = vst [vmem:[%s316 + $0x10] sm:$0xff] %v2254
        %2269 = vst [vmem:[%s316 + $0x18] sm:$0xff] %v2255
        %2270 = vst [vmem:[%s316 + $0x20] sm:$0xff] %v2256
        %2271 = vst [vmem:[%s316 + $0x28] sm:$0xff] %v2257
        %2272 = vst.msk [vmem:[%s316 + $0x30] sm:$0xff] %vm350, %v2258
        %2273 = vst [vmem:[%s316 + $0x38] sm:$0xff] %v2259
        %2274 = vst [vmem:[%s316 + $0x40] sm:$0xff] %v2260
        %2275 = vst [vmem:[%s316 + $0x48] sm:$0xff] %v2261
        %2276 = vst [vmem:[%s316 + $0x50] sm:$0xff] %v2262
        %2277 = vst [vmem:[%s316 + $0x58] sm:$0xff] %v2263
        %2278 = vst [vmem:[%s316 + $0x60] sm:$0xff] %v2264
        %2279 = vst.msk [vmem:[%s316 + $0x68] sm:$0xff] %vm350, %v2265
        %s2280 = sand.u32 %s192, 1
        %s2281 = scalar_lea.sflag [#allocation5], %s2280
        %s2282 = sand.u32 %s192, 1
        %s2283 = smul.addr %s2282, 112
        %s2284 = scalar_lea.vmem [#allocation6], %s2283
        // Predicated region
        $region53: #{tpu_custom_call.1} parent=47 // pred_check
          %p2285 = pneg %p202
        $region54: #{tpu_custom_call.1} parent=47 // pred_check_branch
          %2287 = sbr.rel (%p2285) target = $region56
        $region55: #{tpu_custom_call.1} parent=47 // pred_region
          %s2289 = ssub.s32 1792, 1792
          %2290 = vsyncadd %s2281, %s2289
          %s2291 = smul.addr %s22, 14
          %s2292 = smul.addr %s2291, 128
          %s2293 = scalar_lea.hbm %s7, %s2292
          %s2294 = sshll.u32 %s2284, 4
          %s2295 = int_to_ptr.vmem [resolvable:$true] %s2294
          %2300 = dma.vmem_to_hbm [thread:$0]  %s2295, 1792, %s2293, %s2281, 896, 896, 56
        $region56: #{tpu_custom_call.1} parent=47 // pred_fallthru
          _
      $region48: #{tpu_custom_call.1} parent=5 // pred_fallthru
        _
      %p2301 = scmp.le.s32.totalorder 2, %s17
      // Predicated region
      $region57: #{tpu_custom_call.1} parent=5 // pred_check
        %p2302 = pneg %p2301
      $region58: #{tpu_custom_call.1} parent=5 // pred_check_branch
        %2304 = sbr.rel (%p2302) target = $region60
      $region59: #{tpu_custom_call.1} parent=5 // pred_region
        %s2305 = ssub.s32 %s17, 2
        // Predicated region
        $region61: #{tpu_custom_call.1} parent=59 // pred_check
          %p2306 = pneg %p208
        $region62: #{tpu_custom_call.1} parent=59 // pred_check_branch
          %2308 = sbr.rel (%p2306) target = $region64
        $region63: #{tpu_custom_call.1} parent=59 // pred_region
          %s2309 = sand.u32 %s193, 1
          %s2310 = scalar_lea.sflag [#allocation5], %s2309
          %s2311 = sand.u32 %s193, 1
          %s2312 = smul.addr %s2311, 112
          %s2313 = scalar_lea.vmem [#allocation6], %s2312
          %2314 = dma.done %s2310, 1792
        $region64: #{tpu_custom_call.1} parent=59 // pred_fallthru
          _
      $region60: #{tpu_custom_call.1} parent=5 // pred_fallthru
        _
    $region6: #{tpu_custom_call.1} parent=1 // loop_footer
      %s21 = sadd.s32 1, %s17
    $region7: #{tpu_custom_call.1} parent=1 // loop_footer_branch
      %16 = sbr.rel target = $region3
    $region8: #{tpu_custom_call.1} parent=1 // loop_exit
      _
    %2315 = vsyncpa [#allocation4], 1
    %s2316 = scalar_lea.sflag [#allocation4], 1
    %2317 = vsyncpa %s2316, 1
    %2318 = vsyncpa [#allocation5], 1
    %s2319 = scalar_lea.sflag [#allocation5], 1
    %2320 = vsyncpa %s2319, 1

</llo_original>
